<compile_context>
chip_gen: v5e
topology: v5e:2x2
jax: 0.10.0
libtpu: 0.0.40
codegen_flags: <defaults>
</compile_context>

<pallas_src>
import functools

import jax
import jax.numpy as jnp
from jax import lax
from jax.experimental import pallas as pl
from jax.experimental.pallas import tpu as pltpu

# ---- configuration (mirrors the args the module expects) -------------------
LATENT_DIM = 8
NUM_HIDDEN = 32
NUM_LAYERS = 2          # two hidden layers + final projection back to latent
LN_EPS = 1e-5           # PyTorch nn.LayerNorm default
BATCH = 256             # stack trajectories / posterior samples: >=128 fills
                        # the MXU; must be a multiple of 8.
PAD = 128               # lane-dense padded feature width
BATCH_BLOCK = 128       # per-grid-block batch rows for the rollout kernel


# --------------------------- in-kernel helpers -------------------------------
def _layernorm(h, gamma, beta, mask):
    """Padding-safe two-pass LayerNorm over the logical feature width.

    `mask` is True on the NUM_HIDDEN logical lanes.  Padded lanes of `h` are
    exactly zero, so the masked mean is correct; centered values are masked
    before squaring so padded lanes do not pollute the variance.  gamma/beta
    are zero in padded lanes, so padded output lanes come out exactly zero.
    """
    inv_n = 1.0 / float(NUM_HIDDEN)
    m = jnp.sum(h, axis=-1, keepdims=True) * inv_n
    d = jnp.where(mask, h - m, 0.0)
    var = jnp.sum(d * d, axis=-1, keepdims=True) * inv_n
    return d * lax.rsqrt(var + LN_EPS) * gamma + beta


def _load_consts(v_ref):
    """Load bias/gamma/beta rows and build the logical-lane mask ONCE."""
    vec = v_ref[...]                                    # (8, PAD) f32
    mask = lax.broadcasted_iota(jnp.int32, (1, PAD), 1) < NUM_HIDDEN
    return (vec[0:1], vec[1:2], vec[2:3],
            vec[3:4], vec[4:5], vec[5:6],
            vec[6:7], mask)


def _mlp_padded(x, w_ref, consts):
    """Fused (Linear -> LayerNorm -> relu)x2 -> Linear -> tanh MLP.

    x: (B, PAD) f32, lanes >= LATENT_DIM are zero.
    w_ref: (3*PAD, PAD) VMEM ref (f32 or bf16), [W0 | W1 | W2] zero-padded.
    consts: hoisted (b0,g0,be0,b1,g1,be1,b2,mask).
    Returns (B, PAD) f32 with padded lanes exactly zero.
    """
    b0, g0, be0, b1, g1, be1, b2, mask = consts
    wd = w_ref.dtype   # dots run in the weight dtype (bf16 on v6e/v7x path)

    h = jnp.dot(x.astype(wd), w_ref[0:PAD, :],
                preferred_element_type=jnp.float32) + b0
    h = jnp.maximum(_layernorm(h, g0, be0, mask), 0.0)

    h = jnp.dot(h.astype(wd), w_ref[PAD:2 * PAD, :],
                preferred_element_type=jnp.float32) + b1
    h = jnp.maximum(_layernorm(h, g1, be1, mask), 0.0)

    h = jnp.dot(h.astype(wd), w_ref[2 * PAD:3 * PAD, :],
                preferred_element_type=jnp.float32) + b2
    return jnp.tanh(h)


# ------------------------------- kernels -------------------------------------
def ode_func_kernel(x_ref, w_ref, v_ref, o_ref):
    """Single dynamics evaluation f(t, x) (== module forward)."""
    consts = _load_consts(v_ref)
    o_ref[...] = _mlp_padded(x_ref[...], w_ref, consts)


def ode_rollout_kernel(x0_ref, w_ref, v_ref, o_ref, *, num_steps, dt):
    """Fused explicit-Euler rollout: the ENTIRE time loop is one in-kernel
    fori_loop (no per-step grid bookkeeping).  State is carried as the loop
    value and stored to the output block exactly once."""
    consts = _load_consts(v_ref)            # hoisted out of the time loop

    def body(_, x):
        return x + dt * _mlp_padded(x, w_ref, consts)

    o_ref[...] = lax.fori_loop(0, num_steps, body, x0_ref[...])


# ------------------------------- wrappers -------------------------------------
def _pad_lane(a, width=PAD):
    out = jnp.zeros((a.shape[0], width), a.dtype)
    return out.at[:, : a.shape[1]].set(a)


def _cost_estimate(batch, num_steps=1):
    return pl.CostEstimate(
        flops=num_steps * 3 * 2 * batch * PAD * PAD,
        transcendentals=num_steps * batch * (PAD + 2),
        bytes_accessed=4 * (2 * batch * PAD + 8 * PAD) + 4 * 3 * PAD * PAD,
    )


def ode_function_forward(t, x, w_slab, v_slab):
    """f(t, x): matches the PyTorch module forward. `t` is ignored."""
    del t
    batch = x.shape[0]
    x_pad = _pad_lane(x)
    vmem = pl.BlockSpec(memory_space=pltpu.MemorySpace.VMEM)
    out_pad = pl.pallas_call(
        ode_func_kernel,
        out_shape=jax.ShapeDtypeStruct((batch, PAD), jnp.float32),
        in_specs=[vmem, vmem, vmem],
        out_specs=vmem,
        cost_estimate=_cost_estimate(batch),
    )(x_pad, w_slab, v_slab)
    return out_pad[:, :LATENT_DIM]


def ode_function_rollout(x0, w_slab, v_slab, num_steps, dt,
                         batch_block=BATCH_BLOCK):
    """Fused Euler integration of x' = f(t, x) for `num_steps` steps.

    Grid = batch blocks only ("parallel": splits across v7x's two TCs, no-op
    on v5e/v6e); the time loop runs entirely inside the kernel.  Weights use
    constant index_maps so they are DMA'd once per batch block.
    """
    batch = x0.shape[0]
    bb = min(batch_block, max(8, batch))
    n_blocks = pl.cdiv(batch, bb)
    pb = n_blocks * bb
    x_pad = jnp.zeros((pb, PAD), jnp.float32).at[:batch, :LATENT_DIM].set(x0)

    out_pad = pl.pallas_call(
        functools.partial(ode_rollout_kernel,
                          num_steps=int(num_steps), dt=float(dt)),
        out_shape=jax.ShapeDtypeStruct((pb, PAD), jnp.float32),
        grid=(n_blocks,),
        in_specs=[
            pl.BlockSpec((bb, PAD), lambda b: (b, 0)),
            pl.BlockSpec((3 * PAD, PAD), lambda b: (0, 0)),
            pl.BlockSpec((8, PAD), lambda b: (0, 0)),
        ],
        out_specs=pl.BlockSpec((bb, PAD), lambda b: (b, 0)),
        compiler_params=pltpu.CompilerParams(
            dimension_semantics=("parallel",)),
        cost_estimate=_cost_estimate(pb, num_steps),
    )(x_pad, w_slab, v_slab)
    return out_pad[:batch, :LATENT_DIM]


# ------------------------ parameter construction -----------------------------
def make_params(key):
    """Deterministic 'sampled' BayesLinear weights (mu=0, sigma=0.1) plus
    LayerNorm affine params (gamma=1, beta=0), all fp32, LOGICAL shapes."""
    dims = [LATENT_DIM] + NUM_LAYERS * [NUM_HIDDEN] + [LATENT_DIM]
    params = []
    keys = jax.random.split(key, 2 * len(dims))
    k_idx = 0
    for i, (n_in, n_out) in enumerate(zip(dims[:-1], dims[1:])):
        w = 0.1 * jax.random.normal(keys[k_idx], (n_in, n_out), jnp.float32)
        k_idx += 1
        b = 0.1 * jax.random.normal(keys[k_idx], (1, n_out), jnp.float32)
        k_idx += 1
        params.extend([w, b])
        if i < NUM_LAYERS:
            params.extend([jnp.ones((1, n_out), jnp.float32),
                           jnp.zeros((1, n_out), jnp.float32)])
    return tuple(params)


def pack_params(params, weight_dtype=jnp.float32):
    """Pack logical params into two (8,128)-aligned, zero-padded VMEM slabs.

    weight slab: (384,128) in `weight_dtype` (f32 exact / bf16 MXU-native).
    vector slab: (8,128) f32, rows: b0,g0,be0,b1,g1,be1,b2,<pad>.
    """
    (w0, b0, g0, be0, w1, b1, g1, be1, w2, b2) = params

    def pad_w(w):
        out = jnp.zeros((PAD, PAD), jnp.float32)
        return out.at[: w.shape[0], : w.shape[1]].set(w)

    def pad_v(v):
        out = jnp.zeros((1, PAD), jnp.float32)
        return out.at[:, : v.shape[1]].set(v)

    w_slab = jnp.concatenate([pad_w(w0), pad_w(w1), pad_w(w2)],
                             axis=0).astype(weight_dtype)                 # (384,128)
    v_slab = jnp.concatenate(
        [pad_v(b0), pad_v(g0), pad_v(be0),
         pad_v(b1), pad_v(g1), pad_v(be1),
         pad_v(b2), jnp.zeros((1, PAD), jnp.float32)], axis=0)            # (8,128)
    return w_slab, v_slab


# ------------------------------ reference -------------------------------------
def reference_forward(t, x, params):
    """Pure-JAX reference (logical shapes) for correctness checks."""
    del t
    (w0, b0, g0, be0, w1, b1, g1, be1, w2, b2) = params

    def ln(h, g, be):
        m = jnp.mean(h, -1, keepdims=True)
        v = jnp.mean((h - m) ** 2, -1, keepdims=True)
        return (h - m) / jnp.sqrt(v + LN_EPS) * g + be

    h = jnp.maximum(ln(x @ w0 + b0, g0, be0), 0.0)
    h = jnp.maximum(ln(h @ w1 + b1, g1, be1), 0.0)
    return jnp.tanh(h @ w2 + b2)


# --------------------------------- main ---------------------------------------
if __name__ == "__main__":
    key = jax.random.PRNGKey(0)
    k_param, k_x = jax.random.split(key)
    params = make_params(k_param)
    w_f32, v_slab = pack_params(params, jnp.float32)
    w_bf16 = w_f32.astype(jnp.bfloat16)          # MXU-native path (v6e/v7x)
    x = jax.random.normal(k_x, (BATCH, LATENT_DIM), jnp.float32)
    t = jnp.float32(0.0)  # unused, matches odeint signature

    ref = reference_forward(t, x, params)

    # --- single dynamics evaluation, f32 weights (exact parity) ---
    out_f32 = jax.block_until_ready(ode_function_forward(t, x, w_f32, v_slab))
    assert out_f32.shape == (BATCH, LATENT_DIM)
    assert jnp.allclose(out_f32, ref, atol=1e-5, rtol=1e-5), "f32 forward mismatch"

    # --- single dynamics evaluation, bf16 weights (MXU-native, relaxed tol) ---
    out_bf16 = jax.block_until_ready(ode_function_forward(t, x, w_bf16, v_slab))
    assert jnp.allclose(out_bf16, ref, atol=5e-2, rtol=5e-2), "bf16 forward mismatch"

    # --- fused multi-step rollout (single kernel, in-kernel time loop) ---
    NUM_STEPS, DT = 20, 0.05
    x_ref_state = x
    for _ in range(NUM_STEPS):
        x_ref_state = x_ref_state + DT * reference_forward(t, x_ref_state, params)

    x_final = jax.block_until_ready(
        ode_function_rollout(x, w_f32, v_slab, NUM_STEPS, DT))
    assert x_final.shape == (BATCH, LATENT_DIM)
    assert jnp.allclose(x_final, x_ref_state, atol=1e-4, rtol=1e-4), \
        "f32 rollout mismatch"

    x_final_bf16 = jax.block_until_ready(
        ode_function_rollout(x, w_bf16, v_slab, NUM_STEPS, DT))
    assert jnp.allclose(x_final_bf16, x_ref_state, atol=1e-1, rtol=1e-1), \
        "bf16 rollout mismatch"

    print("KERNEL_OK")
</pallas_src>

<mosaic_0001>
module attributes {stable_mosaic.version = 11 : i64} {
  func.func @ode_func_kernel(%arg0: memref<256x128xf32, #tpu.memory_space<vmem>>, %arg1: memref<384x128xf32, #tpu.memory_space<vmem>>, %arg2: memref<8x128xf32, #tpu.memory_space<vmem>>, %arg3: memref<256x128xf32, #tpu.memory_space<vmem>>) attributes {dimension_semantics = [], scalar_prefetch = 0 : i64, scratch_operands = 0 : i64, tpu.core_type = #tpu.core_type<tc>} {
    %c0 = arith.constant 0 : index
    %c0_0 = arith.constant 0 : index
    %0 = vector.load %arg2[%c0, %c0_0] : memref<8x128xf32, #tpu.memory_space<vmem>>, vector<8x128xf32>
    %1 = tpu.iota {dimensions = array<i32: 1>} : vector<1x128xi32>
    %c32_i32 = arith.constant 32 : i32
    %2 = vector.broadcast %c32_i32 : i32 to vector<1x128xi32>
    %3 = arith.cmpi slt, %1, %2 : vector<1x128xi32>
    %4 = vector.extract_strided_slice %0 {offsets = [0, 0], sizes = [1, 128], strides = [1, 1]} : vector<8x128xf32> to vector<1x128xf32>
    %5 = vector.extract_strided_slice %0 {offsets = [1, 0], sizes = [1, 128], strides = [1, 1]} : vector<8x128xf32> to vector<1x128xf32>
    %6 = vector.extract_strided_slice %0 {offsets = [2, 0], sizes = [1, 128], strides = [1, 1]} : vector<8x128xf32> to vector<1x128xf32>
    %7 = vector.extract_strided_slice %0 {offsets = [3, 0], sizes = [1, 128], strides = [1, 1]} : vector<8x128xf32> to vector<1x128xf32>
    %8 = vector.extract_strided_slice %0 {offsets = [4, 0], sizes = [1, 128], strides = [1, 1]} : vector<8x128xf32> to vector<1x128xf32>
    %9 = vector.extract_strided_slice %0 {offsets = [5, 0], sizes = [1, 128], strides = [1, 1]} : vector<8x128xf32> to vector<1x128xf32>
    %10 = vector.extract_strided_slice %0 {offsets = [6, 0], sizes = [1, 128], strides = [1, 1]} : vector<8x128xf32> to vector<1x128xf32>
    %c0_1 = arith.constant 0 : index
    %c0_2 = arith.constant 0 : index
    %11 = vector.load %arg0[%c0_1, %c0_2] : memref<256x128xf32, #tpu.memory_space<vmem>>, vector<256x128xf32>
    %c0_3 = arith.constant 0 : index
    %c0_4 = arith.constant 0 : index
    %12 = vector.load %arg1[%c0_3, %c0_4] : memref<384x128xf32, #tpu.memory_space<vmem>>, vector<128x128xf32>
    %cst = arith.constant dense<0.000000e+00> : vector<256x128xf32>
    %13 = tpu.matmul %11, %12, %cst {dimension_numbers = #tpu.dot_dimension_numbers<[1], [0], [0], [1], [0, 0, 1, 1], [], []>} : vector<256x128xf32>, vector<128x128xf32>, vector<256x128xf32> -> vector<256x128xf32>
    %14 = vector.broadcast %4 : vector<1x128xf32> to vector<256x128xf32>
    %15 = arith.addf %13, %14 : vector<256x128xf32>
    %cst_5 = arith.constant dense<0.000000e+00> : vector<256xf32>
    %16 = vector.multi_reduction <add>, %15, %cst_5 [1] : vector<256x128xf32> to vector<256xf32>
    %17 = vector.shape_cast %16 : vector<256xf32> to vector<256x1xf32>
    %cst_6 = arith.constant 3.125000e-02 : f32
    %18 = vector.broadcast %cst_6 : f32 to vector<256x1xf32>
    %19 = arith.mulf %17, %18 : vector<256x1xf32>
    %20 = vector.broadcast %19 : vector<256x1xf32> to vector<256x128xf32>
    %21 = arith.subf %15, %20 : vector<256x128xf32>
    %cst_7 = arith.constant 0.000000e+00 : f32
    %22 = vector.shape_cast %3 : vector<1x128xi1> to vector<1x128xi1>
    %23 = vector.broadcast %22 : vector<1x128xi1> to vector<256x128xi1>
    %24 = vector.broadcast %cst_7 : f32 to vector<256x128xf32>
    %25 = arith.select %23, %21, %24 : vector<256x128xi1>, vector<256x128xf32>
    %26 = arith.mulf %25, %25 : vector<256x128xf32>
    %cst_8 = arith.constant dense<0.000000e+00> : vector<256xf32>
    %27 = vector.multi_reduction <add>, %26, %cst_8 [1] : vector<256x128xf32> to vector<256xf32>
    %28 = vector.shape_cast %27 : vector<256xf32> to vector<256x1xf32>
    %cst_9 = arith.constant 3.125000e-02 : f32
    %29 = vector.broadcast %cst_9 : f32 to vector<256x1xf32>
    %30 = arith.mulf %28, %29 : vector<256x1xf32>
    %cst_10 = arith.constant 9.99999974E-6 : f32
    %31 = vector.broadcast %cst_10 : f32 to vector<256x1xf32>
    %32 = arith.addf %30, %31 : vector<256x1xf32>
    %33 = math.rsqrt %32 : vector<256x1xf32>
    %34 = vector.broadcast %33 : vector<256x1xf32> to vector<256x128xf32>
    %35 = arith.mulf %25, %34 : vector<256x128xf32>
    %36 = vector.broadcast %5 : vector<1x128xf32> to vector<256x128xf32>
    %37 = arith.mulf %35, %36 : vector<256x128xf32>
    %38 = vector.broadcast %6 : vector<1x128xf32> to vector<256x128xf32>
    %39 = arith.addf %37, %38 : vector<256x128xf32>
    %cst_11 = arith.constant 0.000000e+00 : f32
    %40 = vector.broadcast %cst_11 : f32 to vector<256x128xf32>
    %41 = arith.maximumf %39, %40 : vector<256x128xf32>
    %c128 = arith.constant 128 : index
    %c0_12 = arith.constant 0 : index
    %42 = vector.load %arg1[%c128, %c0_12] : memref<384x128xf32, #tpu.memory_space<vmem>>, vector<128x128xf32>
    %cst_13 = arith.constant dense<0.000000e+00> : vector<256x128xf32>
    %43 = tpu.matmul %41, %42, %cst_13 {dimension_numbers = #tpu.dot_dimension_numbers<[1], [0], [0], [1], [0, 0, 1, 1], [], []>} : vector<256x128xf32>, vector<128x128xf32>, vector<256x128xf32> -> vector<256x128xf32>
    %44 = vector.broadcast %7 : vector<1x128xf32> to vector<256x128xf32>
    %45 = arith.addf %43, %44 : vector<256x128xf32>
    %cst_14 = arith.constant dense<0.000000e+00> : vector<256xf32>
    %46 = vector.multi_reduction <add>, %45, %cst_14 [1] : vector<256x128xf32> to vector<256xf32>
    %47 = vector.shape_cast %46 : vector<256xf32> to vector<256x1xf32>
    %cst_15 = arith.constant 3.125000e-02 : f32
    %48 = vector.broadcast %cst_15 : f32 to vector<256x1xf32>
    %49 = arith.mulf %47, %48 : vector<256x1xf32>
    %50 = vector.broadcast %49 : vector<256x1xf32> to vector<256x128xf32>
    %51 = arith.subf %45, %50 : vector<256x128xf32>
    %cst_16 = arith.constant 0.000000e+00 : f32
    %52 = vector.shape_cast %3 : vector<1x128xi1> to vector<1x128xi1>
    %53 = vector.broadcast %52 : vector<1x128xi1> to vector<256x128xi1>
    %54 = vector.broadcast %cst_16 : f32 to vector<256x128xf32>
    %55 = arith.select %53, %51, %54 : vector<256x128xi1>, vector<256x128xf32>
    %56 = arith.mulf %55, %55 : vector<256x128xf32>
    %cst_17 = arith.constant dense<0.000000e+00> : vector<256xf32>
    %57 = vector.multi_reduction <add>, %56, %cst_17 [1] : vector<256x128xf32> to vector<256xf32>
    %58 = vector.shape_cast %57 : vector<256xf32> to vector<256x1xf32>
    %cst_18 = arith.constant 3.125000e-02 : f32
    %59 = vector.broadcast %cst_18 : f32 to vector<256x1xf32>
    %60 = arith.mulf %58, %59 : vector<256x1xf32>
    %cst_19 = arith.constant 9.99999974E-6 : f32
    %61 = vector.broadcast %cst_19 : f32 to vector<256x1xf32>
    %62 = arith.addf %60, %61 : vector<256x1xf32>
    %63 = math.rsqrt %62 : vector<256x1xf32>
    %64 = vector.broadcast %63 : vector<256x1xf32> to vector<256x128xf32>
    %65 = arith.mulf %55, %64 : vector<256x128xf32>
    %66 = vector.broadcast %8 : vector<1x128xf32> to vector<256x128xf32>
    %67 = arith.mulf %65, %66 : vector<256x128xf32>
    %68 = vector.broadcast %9 : vector<1x128xf32> to vector<256x128xf32>
    %69 = arith.addf %67, %68 : vector<256x128xf32>
    %cst_20 = arith.constant 0.000000e+00 : f32
    %70 = vector.broadcast %cst_20 : f32 to vector<256x128xf32>
    %71 = arith.maximumf %69, %70 : vector<256x128xf32>
    %c256 = arith.constant 256 : index
    %c0_21 = arith.constant 0 : index
    %72 = vector.load %arg1[%c256, %c0_21] : memref<384x128xf32, #tpu.memory_space<vmem>>, vector<128x128xf32>
    %cst_22 = arith.constant dense<0.000000e+00> : vector<256x128xf32>
    %73 = tpu.matmul %71, %72, %cst_22 {dimension_numbers = #tpu.dot_dimension_numbers<[1], [0], [0], [1], [0, 0, 1, 1], [], []>} : vector<256x128xf32>, vector<128x128xf32>, vector<256x128xf32> -> vector<256x128xf32>
    %74 = vector.broadcast %10 : vector<1x128xf32> to vector<256x128xf32>
    %75 = arith.addf %73, %74 : vector<256x128xf32>
    %76 = math.tanh %75 : vector<256x128xf32>
    %c0_23 = arith.constant 0 : index
    %c0_24 = arith.constant 0 : index
    %77 = vector.load %arg3[%c0_23, %c0_24] : memref<256x128xf32, #tpu.memory_space<vmem>>, vector<256x128xf32>
    tpu.vector_store %arg3[%c0_23, %c0_24], %76 {strides = array<i32>} : memref<256x128xf32, #tpu.memory_space<vmem>>, vector<256x128xf32>,
    return
  }
}

</mosaic_0001>

<llo_original>
// kernel: tpu_custom_call.1
$region0: #{tpu_custom_call.1}
  #allocation0 [shape = 'u32[]', space=smem, size = 0x4, offset = 0x4, fixed_abs, tag = 'smem constant byte address 0x4 - core index']
  #allocation1 [shape = 'u32[72,128]{1,0:T(1,128)}', space=vmem, size = 0x9000, scoped, tag = 'internal scratch']
  %s0 = inlined_call_operand.hbm [shape: f32[256,128], index: 0, kind: input, shape index: {}]
  %s1 = inlined_call_operand.hbm [shape: f32[384,128], index: 1, kind: input, shape index: {}]
  %s2 = inlined_call_operand.hbm [shape: f32[8,128], index: 2, kind: input, shape index: {}]
  %s3 = inlined_call_operand.hbm [shape: f32[256,128], index: 3, kind: output, shape index: {}]
  %s4 = sld [smem:[#allocation0]]
  $region34: #{tpu_custom_call.1} parent=0
    _
  %s6 = ssub.s32 1, %s4
  %s7 = scalar_select 0, %s6, %s4
  $region1: #{tpu_custom_call.1} parent=0
    #allocation2 [shape = 'u8[131072]{0}', space=vmem, size = 0x20000, scoped, tag = 'input window, operand 0, single buffered']
    #allocation3 [shape = 's32[1]{0}', space=sflag, size = 0x4, scoped, tag = 'scoped memory for tpu_custom_call.1']
    #allocation4 [shape = 's32[1]{0}', space=sflag, size = 0x4, scoped, tag = 'scoped memory for tpu_custom_call.1']
    #allocation5 [shape = 'u8[196608]{0}', space=vmem, size = 0x30000, scoped, tag = 'input window, operand 1, single buffered']
    #allocation6 [shape = 's32[1]{0}', space=sflag, size = 0x4, scoped, tag = 'scoped memory for tpu_custom_call.1']
    #allocation7 [shape = 'u8[4096]{0}', space=vmem, size = 0x1000, scoped, tag = 'input window, operand 2, single buffered']
    #allocation8 [shape = 'u8[131072]{0}', space=vmem, size = 0x20000, scoped, tag = 'output window, operand 0, single buffered']
    %8 = vsyncpa [#allocation3], 0
    %9 = vsyncpa [#allocation6], 0
    %10 = vsyncpa [#allocation4], 0
    // Predicated region
    $region2: #{tpu_custom_call.1} parent=1 // pred_check
      _
    $region3: #{tpu_custom_call.1} parent=1 // pred_check_branch
      %12 = sbr.rel (0) target = $region5
    $region4: #{tpu_custom_call.1} parent=1 // pred_region
      %14 = vsyncadd [#allocation3], 0
      %s15 = sshll.u32 %s0, 4
      %s16 = int_to_ptr.hbm [resolvable:$true] %s15
      %s17 = sshll.u32 [#allocation2], 4
      %s18 = int_to_ptr.vmem [resolvable:$true] %s17
      %23 = dma.hbm_to_vmem [thread:$0]  %s16, 4096, %s18, [#allocation3], 128, 128, 8
    $region5: #{tpu_custom_call.1} parent=1 // pred_fallthru
      _
    // Predicated region
    $region6: #{tpu_custom_call.1} parent=1 // pred_check
      _
    $region7: #{tpu_custom_call.1} parent=1 // pred_check_branch
      %25 = sbr.rel (0) target = $region9
    $region8: #{tpu_custom_call.1} parent=1 // pred_region
      %27 = vsyncadd [#allocation6], 0
      %s28 = sshll.u32 %s1, 4
      %s29 = int_to_ptr.hbm [resolvable:$true] %s28
      %s30 = sshll.u32 [#allocation5], 4
      %s31 = int_to_ptr.vmem [resolvable:$true] %s30
      %36 = dma.hbm_to_vmem [thread:$0]  %s29, 6144, %s31, [#allocation6], 128, 128, 8
    $region9: #{tpu_custom_call.1} parent=1 // pred_fallthru
      _
    // Predicated region
    $region10: #{tpu_custom_call.1} parent=1 // pred_check
      _
    $region11: #{tpu_custom_call.1} parent=1 // pred_check_branch
      %38 = sbr.rel (0) target = $region13
    $region12: #{tpu_custom_call.1} parent=1 // pred_region
      %40 = vsyncadd [#allocation6], 0
      %s42 = sshll.u32 %s2, 4
      %s43 = int_to_ptr.hbm [resolvable:$true] %s42
      %s44 = sshll.u32 [#allocation7], 4
      %s45 = int_to_ptr.vmem [resolvable:$true] %s44
      %47 = dma.hbm_to_vmem [thread:$0]  %s43, 128, %s45, [#allocation6]
    $region13: #{tpu_custom_call.1} parent=1 // pred_fallthru
      _
    // Predicated region
    $region14: #{tpu_custom_call.1} parent=1 // pred_check
      _
    $region15: #{tpu_custom_call.1} parent=1 // pred_check_branch
      %49 = sbr.rel (0) target = $region17
    $region16: #{tpu_custom_call.1} parent=1 // pred_region
      %51 = dma.done [#allocation3], 4096
    $region17: #{tpu_custom_call.1} parent=1 // pred_fallthru
      _
    // Predicated region
    $region18: #{tpu_custom_call.1} parent=1 // pred_check
      _
    $region19: #{tpu_custom_call.1} parent=1 // pred_check_branch
      %53 = sbr.rel (0) target = $region21
    $region20: #{tpu_custom_call.1} parent=1 // pred_region
      %55 = dma.done [#allocation6], 6144
    $region21: #{tpu_custom_call.1} parent=1 // pred_fallthru
      _
    // Predicated region
    $region22: #{tpu_custom_call.1} parent=1 // pred_check
      _
    $region23: #{tpu_custom_call.1} parent=1 // pred_check_branch
      %57 = sbr.rel (0) target = $region25
    $region24: #{tpu_custom_call.1} parent=1 // pred_region
      %59 = dma.done [#allocation6], 128
    $region25: #{tpu_custom_call.1} parent=1 // pred_fallthru
      _
    %v60 = vld [vmem:[#allocation7] sm:$0xff]
    %v61 = vlaneseq
    %v62 = vand.u32 %v61, 127
    %vm63 = vcmp.lt.s32.totalorder %v62, 32
    %v64 = vld [vmem:[#allocation2] sm:$0xff]
    %v65 = vld [vmem:[#allocation2 + $0x8] sm:$0xff]
    %v66 = vld [vmem:[#allocation2 + $0x10] sm:$0xff]
    %v67 = vld [vmem:[#allocation2 + $0x18] sm:$0xff]
    %v68 = vld [vmem:[#allocation2 + $0x20] sm:$0xff]
    %v69 = vld [vmem:[#allocation2 + $0x28] sm:$0xff]
    %v70 = vld [vmem:[#allocation2 + $0x30] sm:$0xff]
    %v71 = vld [vmem:[#allocation2 + $0x38] sm:$0xff]
    %v72 = vld [vmem:[#allocation2 + $0x40] sm:$0xff]
    %v73 = vld [vmem:[#allocation2 + $0x48] sm:$0xff]
    %v74 = vld [vmem:[#allocation2 + $0x50] sm:$0xff]
    %v75 = vld [vmem:[#allocation2 + $0x58] sm:$0xff]
    %v76 = vld [vmem:[#allocation2 + $0x60] sm:$0xff]
    %v77 = vld [vmem:[#allocation2 + $0x68] sm:$0xff]
    %v78 = vld [vmem:[#allocation2 + $0x70] sm:$0xff]
    %v79 = vld [vmem:[#allocation2 + $0x78] sm:$0xff]
    %v80 = vld [vmem:[#allocation2 + $0x80] sm:$0xff]
    %v81 = vld [vmem:[#allocation2 + $0x88] sm:$0xff]
    %v82 = vld [vmem:[#allocation2 + $0x90] sm:$0xff]
    %v83 = vld [vmem:[#allocation2 + $0x98] sm:$0xff]
    %v84 = vld [vmem:[#allocation2 + $0xa0] sm:$0xff]
    %v85 = vld [vmem:[#allocation2 + $0xa8] sm:$0xff]
    %v86 = vld [vmem:[#allocation2 + $0xb0] sm:$0xff]
    %v87 = vld [vmem:[#allocation2 + $0xb8] sm:$0xff]
    %v88 = vld [vmem:[#allocation2 + $0xc0] sm:$0xff]
    %v89 = vld [vmem:[#allocation2 + $0xc8] sm:$0xff]
    %v90 = vld [vmem:[#allocation2 + $0xd0] sm:$0xff]
    %v91 = vld [vmem:[#allocation2 + $0xd8] sm:$0xff]
    %v92 = vld [vmem:[#allocation2 + $0xe0] sm:$0xff]
    %v93 = vld [vmem:[#allocation2 + $0xe8] sm:$0xff]
    %v94 = vld [vmem:[#allocation2 + $0xf0] sm:$0xff]
    %v95 = vld [vmem:[#allocation2 + $0xf8] sm:$0xff]
    %v96 = vld [vmem:[#allocation5] sm:$0xff]
    %v97 = vld [vmem:[#allocation5 + $0x8] sm:$0xff]
    %v98 = vld [vmem:[#allocation5 + $0x10] sm:$0xff]
    %v99 = vld [vmem:[#allocation5 + $0x18] sm:$0xff]
    %v100 = vld [vmem:[#allocation5 + $0x20] sm:$0xff]
    %v101 = vld [vmem:[#allocation5 + $0x28] sm:$0xff]
    %v102 = vld [vmem:[#allocation5 + $0x30] sm:$0xff]
    %v103 = vld [vmem:[#allocation5 + $0x38] sm:$0xff]
    %v104 = vld [vmem:[#allocation5 + $0x40] sm:$0xff]
    %v105 = vld [vmem:[#allocation5 + $0x48] sm:$0xff]
    %v106 = vld [vmem:[#allocation5 + $0x50] sm:$0xff]
    %v107 = vld [vmem:[#allocation5 + $0x58] sm:$0xff]
    %v108 = vld [vmem:[#allocation5 + $0x60] sm:$0xff]
    %v109 = vld [vmem:[#allocation5 + $0x68] sm:$0xff]
    %v110 = vld [vmem:[#allocation5 + $0x70] sm:$0xff]
    %v111 = vld [vmem:[#allocation5 + $0x78] sm:$0xff]
    %v112 = vperm.slane %v60, 0
    %113 = vmatpush.msra.mxu0 %v111
    %114 = vmatpush.msra.mxu0 %v110
    %115 = vmatpush.msra.mxu0 %v109
    %116 = vmatpush.msra.mxu0 %v108
    %117 = vmatpush.msra.mxu0 %v107
    %118 = vmatpush.msra.mxu0 %v106
    %119 = vmatpush.msra.mxu0 %v105
    %120 = vmatpush.msra.mxu0 %v104
    %121 = vmatpush.msra.mxu0 %v103
    %122 = vmatpush.msra.mxu0 %v102
    %123 = vmatpush.msra.mxu0 %v101
    %124 = vmatpush.msra.mxu0 %v100
    %125 = vmatpush.msra.mxu0 %v99
    %126 = vmatpush.msra.mxu0 %v98
    %127 = vmatpush.msra.mxu0 %v97
    %128 = vmatpush.msra.mxu0 %v96
    %129 = vmatmul.f32.gmra.mxu0 %v64
    %v130 = vpop.f32.mrf.mxu0
    %v131 = vadd.f32 %v112, %v130
    %132 = vmatmul.f32.gmra.mxu0 %v65
    %v133 = vpop.f32.mrf.mxu0
    %v134 = vadd.f32 %v112, %v133
    %135 = vmatmul.f32.gmra.mxu0 %v66
    %v136 = vpop.f32.mrf.mxu0
    %v137 = vadd.f32 %v112, %v136
    %138 = vmatmul.f32.gmra.mxu0 %v67
    %v139 = vpop.f32.mrf.mxu0
    %v140 = vadd.f32 %v112, %v139
    %141 = vmatmul.f32.gmra.mxu0 %v68
    %v142 = vpop.f32.mrf.mxu0
    %v143 = vadd.f32 %v112, %v142
    %144 = vmatmul.f32.gmra.mxu0 %v69
    %v145 = vpop.f32.mrf.mxu0
    %v146 = vadd.f32 %v112, %v145
    %147 = vmatmul.f32.gmra.mxu0 %v70
    %v148 = vpop.f32.mrf.mxu0
    %v149 = vadd.f32 %v112, %v148
    %150 = vmatmul.f32.gmra.mxu0 %v71
    %v151 = vpop.f32.mrf.mxu0
    %v152 = vadd.f32 %v112, %v151
    %153 = vmatmul.f32.gmra.mxu0 %v72
    %v154 = vpop.f32.mrf.mxu0
    %v155 = vadd.f32 %v112, %v154
    %156 = vmatmul.f32.gmra.mxu0 %v73
    %v157 = vpop.f32.mrf.mxu0
    %v158 = vadd.f32 %v112, %v157
    %159 = vmatmul.f32.gmra.mxu0 %v74
    %v160 = vpop.f32.mrf.mxu0
    %v161 = vadd.f32 %v112, %v160
    %162 = vmatmul.f32.gmra.mxu0 %v75
    %v163 = vpop.f32.mrf.mxu0
    %v164 = vadd.f32 %v112, %v163
    %165 = vmatmul.f32.gmra.mxu0 %v76
    %v166 = vpop.f32.mrf.mxu0
    %v167 = vadd.f32 %v112, %v166
    %168 = vmatmul.f32.gmra.mxu0 %v77
    %v169 = vpop.f32.mrf.mxu0
    %v170 = vadd.f32 %v112, %v169
    %171 = vmatmul.f32.gmra.mxu0 %v78
    %v172 = vpop.f32.mrf.mxu0
    %v173 = vadd.f32 %v112, %v172
    %174 = vmatmul.f32.gmra.mxu0 %v79
    %v175 = vpop.f32.mrf.mxu0
    %v176 = vadd.f32 %v112, %v175
    %177 = vmatmul.f32.gmra.mxu0 %v80
    %v178 = vpop.f32.mrf.mxu0
    %v179 = vadd.f32 %v112, %v178
    %180 = vmatmul.f32.gmra.mxu0 %v81
    %v181 = vpop.f32.mrf.mxu0
    %v182 = vadd.f32 %v112, %v181
    %183 = vmatmul.f32.gmra.mxu0 %v82
    %v184 = vpop.f32.mrf.mxu0
    %v185 = vadd.f32 %v112, %v184
    %186 = vmatmul.f32.gmra.mxu0 %v83
    %v187 = vpop.f32.mrf.mxu0
    %v188 = vadd.f32 %v112, %v187
    %189 = vmatmul.f32.gmra.mxu0 %v84
    %v190 = vpop.f32.mrf.mxu0
    %v191 = vadd.f32 %v112, %v190
    %192 = vmatmul.f32.gmra.mxu0 %v85
    %v193 = vpop.f32.mrf.mxu0
    %v194 = vadd.f32 %v112, %v193
    %195 = vmatmul.f32.gmra.mxu0 %v86
    %v196 = vpop.f32.mrf.mxu0
    %v197 = vadd.f32 %v112, %v196
    %198 = vmatmul.f32.gmra.mxu0 %v87
    %v199 = vpop.f32.mrf.mxu0
    %v200 = vadd.f32 %v112, %v199
    %201 = vmatmul.f32.gmra.mxu0 %v88
    %v202 = vpop.f32.mrf.mxu0
    %v203 = vadd.f32 %v112, %v202
    %204 = vmatmul.f32.gmra.mxu0 %v89
    %v205 = vpop.f32.mrf.mxu0
    %v206 = vadd.f32 %v112, %v205
    %207 = vmatmul.f32.gmra.mxu0 %v90
    %v208 = vpop.f32.mrf.mxu0
    %v209 = vadd.f32 %v112, %v208
    %210 = vmatmul.f32.gmra.mxu0 %v91
    %v211 = vpop.f32.mrf.mxu0
    %v212 = vadd.f32 %v112, %v211
    %213 = vmatmul.f32.gmra.mxu0 %v92
    %v214 = vpop.f32.mrf.mxu0
    %v215 = vadd.f32 %v112, %v214
    %216 = vmatmul.f32.gmra.mxu0 %v93
    %v217 = vpop.f32.mrf.mxu0
    %v218 = vadd.f32 %v112, %v217
    %219 = vmatmul.f32.gmra.mxu0 %v94
    %v220 = vpop.f32.mrf.mxu0
    %v221 = vadd.f32 %v112, %v220
    %222 = vmatmul.f32.gmra.mxu0 %v95
    %v223 = vpop.f32.mrf.mxu0
    %v224 = vadd.f32 %v112, %v223
    %225 = vdwg.mxu0
    %226 = vadd.xlane.f32.xlu0 %v131
    %v227 = vpop.xlane.xlu0 %226
    %228 = vadd.xlane.f32.xlu0 %v134
    %v229 = vpop.xlane.xlu0 %228
    %230 = vadd.xlane.f32.xlu0 %v137
    %v231 = vpop.xlane.xlu0 %230
    %232 = vadd.xlane.f32.xlu0 %v140
    %v233 = vpop.xlane.xlu0 %232
    %234 = vadd.xlane.f32.xlu0 %v143
    %v235 = vpop.xlane.xlu0 %234
    %236 = vadd.xlane.f32.xlu0 %v146
    %v237 = vpop.xlane.xlu0 %236
    %238 = vadd.xlane.f32.xlu0 %v149
    %v239 = vpop.xlane.xlu0 %238
    %240 = vadd.xlane.f32.xlu0 %v152
    %v241 = vpop.xlane.xlu0 %240
    %242 = vadd.xlane.f32.xlu0 %v155
    %v243 = vpop.xlane.xlu0 %242
    %244 = vadd.xlane.f32.xlu0 %v158
    %v245 = vpop.xlane.xlu0 %244
    %246 = vadd.xlane.f32.xlu0 %v161
    %v247 = vpop.xlane.xlu0 %246
    %248 = vadd.xlane.f32.xlu0 %v164
    %v249 = vpop.xlane.xlu0 %248
    %250 = vadd.xlane.f32.xlu0 %v167
    %v251 = vpop.xlane.xlu0 %250
    %252 = vadd.xlane.f32.xlu0 %v170
    %v253 = vpop.xlane.xlu0 %252
    %254 = vadd.xlane.f32.xlu0 %v173
    %v255 = vpop.xlane.xlu0 %254
    %256 = vadd.xlane.f32.xlu0 %v176
    %v257 = vpop.xlane.xlu0 %256
    %258 = vadd.xlane.f32.xlu0 %v179
    %v259 = vpop.xlane.xlu0 %258
    %260 = vadd.xlane.f32.xlu0 %v182
    %v261 = vpop.xlane.xlu0 %260
    %262 = vadd.xlane.f32.xlu0 %v185
    %v263 = vpop.xlane.xlu0 %262
    %264 = vadd.xlane.f32.xlu0 %v188
    %v265 = vpop.xlane.xlu0 %264
    %266 = vadd.xlane.f32.xlu0 %v191
    %v267 = vpop.xlane.xlu0 %266
    %268 = vadd.xlane.f32.xlu0 %v194
    %v269 = vpop.xlane.xlu0 %268
    %270 = vadd.xlane.f32.xlu0 %v197
    %v271 = vpop.xlane.xlu0 %270
    %272 = vadd.xlane.f32.xlu0 %v200
    %v273 = vpop.xlane.xlu0 %272
    %274 = vadd.xlane.f32.xlu0 %v203
    %v275 = vpop.xlane.xlu0 %274
    %276 = vadd.xlane.f32.xlu0 %v206
    %v277 = vpop.xlane.xlu0 %276
    %278 = vadd.xlane.f32.xlu0 %v209
    %v279 = vpop.xlane.xlu0 %278
    %280 = vadd.xlane.f32.xlu0 %v212
    %v281 = vpop.xlane.xlu0 %280
    %282 = vadd.xlane.f32.xlu0 %v215
    %v283 = vpop.xlane.xlu0 %282
    %284 = vadd.xlane.f32.xlu0 %v218
    %v285 = vpop.xlane.xlu0 %284
    %286 = vadd.xlane.f32.xlu0 %v221
    %v287 = vpop.xlane.xlu0 %286
    %288 = vadd.xlane.f32.xlu0 %v224
    %v289 = vpop.xlane.xlu0 %288
    %v290 = vmul.f32 %v227, 0.03125
    %v291 = vmul.f32 %v229, 0.03125
    %v292 = vmul.f32 %v231, 0.03125
    %v293 = vmul.f32 %v233, 0.03125
    %v294 = vmul.f32 %v235, 0.03125
    %v295 = vmul.f32 %v237, 0.03125
    %v296 = vmul.f32 %v239, 0.03125
    %v297 = vmul.f32 %v241, 0.03125
    %v298 = vmul.f32 %v243, 0.03125
    %v299 = vmul.f32 %v245, 0.03125
    %v300 = vmul.f32 %v247, 0.03125
    %v301 = vmul.f32 %v249, 0.03125
    %v302 = vmul.f32 %v251, 0.03125
    %v303 = vmul.f32 %v253, 0.03125
    %v304 = vmul.f32 %v255, 0.03125
    %v305 = vmul.f32 %v257, 0.03125
    %v306 = vmul.f32 %v259, 0.03125
    %v307 = vmul.f32 %v261, 0.03125
    %v308 = vmul.f32 %v263, 0.03125
    %v309 = vmul.f32 %v265, 0.03125
    %v310 = vmul.f32 %v267, 0.03125
    %v311 = vmul.f32 %v269, 0.03125
    %v312 = vmul.f32 %v271, 0.03125
    %v313 = vmul.f32 %v273, 0.03125
    %v314 = vmul.f32 %v275, 0.03125
    %v315 = vmul.f32 %v277, 0.03125
    %v316 = vmul.f32 %v279, 0.03125
    %v317 = vmul.f32 %v281, 0.03125
    %v318 = vmul.f32 %v283, 0.03125
    %v319 = vmul.f32 %v285, 0.03125
    %v320 = vmul.f32 %v287, 0.03125
    %v321 = vmul.f32 %v289, 0.03125
    %v322 = vsub.f32 %v131, %v290
    %v323 = vsub.f32 %v134, %v291
    %v324 = vsub.f32 %v137, %v292
    %v325 = vsub.f32 %v140, %v293
    %v326 = vsub.f32 %v143, %v294
    %v327 = vsub.f32 %v146, %v295
    %v328 = vsub.f32 %v149, %v296
    %v329 = vsub.f32 %v152, %v297
    %v330 = vsub.f32 %v155, %v298
    %v331 = vsub.f32 %v158, %v299
    %v332 = vsub.f32 %v161, %v300
    %v333 = vsub.f32 %v164, %v301
    %v334 = vsub.f32 %v167, %v302
    %v335 = vsub.f32 %v170, %v303
    %v336 = vsub.f32 %v173, %v304
    %v337 = vsub.f32 %v176, %v305
    %v338 = vsub.f32 %v179, %v306
    %v339 = vsub.f32 %v182, %v307
    %v340 = vsub.f32 %v185, %v308
    %v341 = vsub.f32 %v188, %v309
    %v342 = vsub.f32 %v191, %v310
    %v343 = vsub.f32 %v194, %v311
    %v344 = vsub.f32 %v197, %v312
    %v345 = vsub.f32 %v200, %v313
    %v346 = vsub.f32 %v203, %v314
    %v347 = vsub.f32 %v206, %v315
    %v348 = vsub.f32 %v209, %v316
    %v349 = vsub.f32 %v212, %v317
    %v350 = vsub.f32 %v215, %v318
    %v351 = vsub.f32 %v218, %v319
    %v352 = vsub.f32 %v221, %v320
    %v353 = vsub.f32 %v224, %v321
    %v354 = vsel %vm63, 1, 0
    %vm355 = vcmp.eq.s32.totalorder %v354, 1
    %v356 = vsel %vm355, %v322, 0.0
    %v357 = vsel %vm355, %v323, 0.0
    %v358 = vsel %vm355, %v324, 0.0
    %v359 = vsel %vm355, %v325, 0.0
    %v360 = vsel %vm355, %v326, 0.0
    %v361 = vsel %vm355, %v327, 0.0
    %v362 = vsel %vm355, %v328, 0.0
    %v363 = vsel %vm355, %v329, 0.0
    %v364 = vsel %vm355, %v330, 0.0
    %v365 = vsel %vm355, %v331, 0.0
    %v366 = vsel %vm355, %v332, 0.0
    %v367 = vsel %vm355, %v333, 0.0
    %v368 = vsel %vm355, %v334, 0.0
    %v369 = vsel %vm355, %v335, 0.0
    %v370 = vsel %vm355, %v336, 0.0
    %v371 = vsel %vm355, %v337, 0.0
    %v372 = vsel %vm355, %v338, 0.0
    %v373 = vsel %vm355, %v339, 0.0
    %v374 = vsel %vm355, %v340, 0.0
    %v375 = vsel %vm355, %v341, 0.0
    %v376 = vsel %vm355, %v342, 0.0
    %v377 = vsel %vm355, %v343, 0.0
    %v378 = vsel %vm355, %v344, 0.0
    %v379 = vsel %vm355, %v345, 0.0
    %v380 = vsel %vm355, %v346, 0.0
    %v381 = vsel %vm355, %v347, 0.0
    %v382 = vsel %vm355, %v348, 0.0
    %v383 = vsel %vm355, %v349, 0.0
    %v384 = vsel %vm355, %v350, 0.0
    %v385 = vsel %vm355, %v351, 0.0
    %v386 = vsel %vm355, %v352, 0.0
    %v387 = vsel %vm355, %v353, 0.0
    %v388 = vmul.f32 %v356, %v356
    %v389 = vmul.f32 %v357, %v357
    %v390 = vmul.f32 %v358, %v358
    %v391 = vmul.f32 %v359, %v359
    %v392 = vmul.f32 %v360, %v360
    %v393 = vmul.f32 %v361, %v361
    %v394 = vmul.f32 %v362, %v362
    %v395 = vmul.f32 %v363, %v363
    %v396 = vmul.f32 %v364, %v364
    %v397 = vmul.f32 %v365, %v365
    %v398 = vmul.f32 %v366, %v366
    %v399 = vmul.f32 %v367, %v367
    %v400 = vmul.f32 %v368, %v368
    %v401 = vmul.f32 %v369, %v369
    %v402 = vmul.f32 %v370, %v370
    %v403 = vmul.f32 %v371, %v371
    %v404 = vmul.f32 %v372, %v372
    %v405 = vmul.f32 %v373, %v373
    %v406 = vmul.f32 %v374, %v374
    %v407 = vmul.f32 %v375, %v375
    %v408 = vmul.f32 %v376, %v376
    %v409 = vmul.f32 %v377, %v377
    %v410 = vmul.f32 %v378, %v378
    %v411 = vmul.f32 %v379, %v379
    %v412 = vmul.f32 %v380, %v380
    %v413 = vmul.f32 %v381, %v381
    %v414 = vmul.f32 %v382, %v382
    %v415 = vmul.f32 %v383, %v383
    %v416 = vmul.f32 %v384, %v384
    %v417 = vmul.f32 %v385, %v385
    %v418 = vmul.f32 %v386, %v386
    %v419 = vmul.f32 %v387, %v387
    %420 = vadd.xlane.f32.xlu0 %v388
    %v421 = vpop.xlane.xlu0 %420
    %422 = vadd.xlane.f32.xlu0 %v389
    %v423 = vpop.xlane.xlu0 %422
    %424 = vadd.xlane.f32.xlu0 %v390
    %v425 = vpop.xlane.xlu0 %424
    %426 = vadd.xlane.f32.xlu0 %v391
    %v427 = vpop.xlane.xlu0 %426
    %428 = vadd.xlane.f32.xlu0 %v392
    %v429 = vpop.xlane.xlu0 %428
    %430 = vadd.xlane.f32.xlu0 %v393
    %v431 = vpop.xlane.xlu0 %430
    %432 = vadd.xlane.f32.xlu0 %v394
    %v433 = vpop.xlane.xlu0 %432
    %434 = vadd.xlane.f32.xlu0 %v395
    %v435 = vpop.xlane.xlu0 %434
    %436 = vadd.xlane.f32.xlu0 %v396
    %v437 = vpop.xlane.xlu0 %436
    %438 = vadd.xlane.f32.xlu0 %v397
    %v439 = vpop.xlane.xlu0 %438
    %440 = vadd.xlane.f32.xlu0 %v398
    %v441 = vpop.xlane.xlu0 %440
    %442 = vadd.xlane.f32.xlu0 %v399
    %v443 = vpop.xlane.xlu0 %442
    %444 = vadd.xlane.f32.xlu0 %v400
    %v445 = vpop.xlane.xlu0 %444
    %446 = vadd.xlane.f32.xlu0 %v401
    %v447 = vpop.xlane.xlu0 %446
    %448 = vadd.xlane.f32.xlu0 %v402
    %v449 = vpop.xlane.xlu0 %448
    %450 = vadd.xlane.f32.xlu0 %v403
    %v451 = vpop.xlane.xlu0 %450
    %452 = vadd.xlane.f32.xlu0 %v404
    %v453 = vpop.xlane.xlu0 %452
    %454 = vadd.xlane.f32.xlu0 %v405
    %v455 = vpop.xlane.xlu0 %454
    %456 = vadd.xlane.f32.xlu0 %v406
    %v457 = vpop.xlane.xlu0 %456
    %458 = vadd.xlane.f32.xlu0 %v407
    %v459 = vpop.xlane.xlu0 %458
    %460 = vadd.xlane.f32.xlu0 %v408
    %v461 = vpop.xlane.xlu0 %460
    %462 = vadd.xlane.f32.xlu0 %v409
    %v463 = vpop.xlane.xlu0 %462
    %464 = vadd.xlane.f32.xlu0 %v410
    %v465 = vpop.xlane.xlu0 %464
    %466 = vadd.xlane.f32.xlu0 %v411
    %v467 = vpop.xlane.xlu0 %466
    %468 = vadd.xlane.f32.xlu0 %v412
    %v469 = vpop.xlane.xlu0 %468
    %470 = vadd.xlane.f32.xlu0 %v413
    %v471 = vpop.xlane.xlu0 %470
    %472 = vadd.xlane.f32.xlu0 %v414
    %v473 = vpop.xlane.xlu0 %472
    %474 = vadd.xlane.f32.xlu0 %v415
    %v475 = vpop.xlane.xlu0 %474
    %476 = vadd.xlane.f32.xlu0 %v416
    %v477 = vpop.xlane.xlu0 %476
    %478 = vadd.xlane.f32.xlu0 %v417
    %v479 = vpop.xlane.xlu0 %478
    %480 = vadd.xlane.f32.xlu0 %v418
    %v481 = vpop.xlane.xlu0 %480
    %482 = vadd.xlane.f32.xlu0 %v419
    %v483 = vpop.xlane.xlu0 %482
    %v484 = vmul.f32 %v421, 0.03125
    %v485 = vmul.f32 %v423, 0.03125
    %v486 = vmul.f32 %v425, 0.03125
    %v487 = vmul.f32 %v427, 0.03125
    %v488 = vmul.f32 %v429, 0.03125
    %v489 = vmul.f32 %v431, 0.03125
    %v490 = vmul.f32 %v433, 0.03125
    %v491 = vmul.f32 %v435, 0.03125
    %v492 = vmul.f32 %v437, 0.03125
    %v493 = vmul.f32 %v439, 0.03125
    %v494 = vmul.f32 %v441, 0.03125
    %v495 = vmul.f32 %v443, 0.03125
    %v496 = vmul.f32 %v445, 0.03125
    %v497 = vmul.f32 %v447, 0.03125
    %v498 = vmul.f32 %v449, 0.03125
    %v499 = vmul.f32 %v451, 0.03125
    %v500 = vmul.f32 %v453, 0.03125
    %v501 = vmul.f32 %v455, 0.03125
    %v502 = vmul.f32 %v457, 0.03125
    %v503 = vmul.f32 %v459, 0.03125
    %v504 = vmul.f32 %v461, 0.03125
    %v505 = vmul.f32 %v463, 0.03125
    %v506 = vmul.f32 %v465, 0.03125
    %v507 = vmul.f32 %v467, 0.03125
    %v508 = vmul.f32 %v469, 0.03125
    %v509 = vmul.f32 %v471, 0.03125
    %v510 = vmul.f32 %v473, 0.03125
    %v511 = vmul.f32 %v475, 0.03125
    %v512 = vmul.f32 %v477, 0.03125
    %v513 = vmul.f32 %v479, 0.03125
    %v514 = vmul.f32 %v481, 0.03125
    %v515 = vmul.f32 %v483, 0.03125
    %v516 = vadd.f32 %v484, 1e-05
    %v517 = vadd.f32 %v485, 1e-05
    %v518 = vadd.f32 %v486, 1e-05
    %v519 = vadd.f32 %v487, 1e-05
    %v520 = vadd.f32 %v488, 1e-05
    %v521 = vadd.f32 %v489, 1e-05
    %v522 = vadd.f32 %v490, 1e-05
    %v523 = vadd.f32 %v491, 1e-05
    %v524 = vadd.f32 %v492, 1e-05
    %v525 = vadd.f32 %v493, 1e-05
    %v526 = vadd.f32 %v494, 1e-05
    %v527 = vadd.f32 %v495, 1e-05
    %v528 = vadd.f32 %v496, 1e-05
    %v529 = vadd.f32 %v497, 1e-05
    %v530 = vadd.f32 %v498, 1e-05
    %v531 = vadd.f32 %v499, 1e-05
    %v532 = vadd.f32 %v500, 1e-05
    %v533 = vadd.f32 %v501, 1e-05
    %v534 = vadd.f32 %v502, 1e-05
    %v535 = vadd.f32 %v503, 1e-05
    %v536 = vadd.f32 %v504, 1e-05
    %v537 = vadd.f32 %v505, 1e-05
    %v538 = vadd.f32 %v506, 1e-05
    %v539 = vadd.f32 %v507, 1e-05
    %v540 = vadd.f32 %v508, 1e-05
    %v541 = vadd.f32 %v509, 1e-05
    %v542 = vadd.f32 %v510, 1e-05
    %v543 = vadd.f32 %v511, 1e-05
    %v544 = vadd.f32 %v512, 1e-05
    %v545 = vadd.f32 %v513, 1e-05
    %v546 = vadd.f32 %v514, 1e-05
    %v547 = vadd.f32 %v515, 1e-05
    %v548 = vrsqrt.pop %v516
    %v549 = vmul.f32 %v548, %v516
    %v550 = vmul.f32 %v549, %v548
    %v551 = vmul.f32 0.5, %v550
    %v552 = vsub.f32 1.5, %v551
    %v553 = vmul.f32 %v548, %v552
    %vm554 = vweird.f32 %v516
    %vm555 = vweird.f32 %v548
    %vm556 = vmor %vm554, %vm555
    %v557 = vsel %vm556, %v548, %v553
    %v558 = vrsqrt.pop %v517
    %v559 = vmul.f32 %v558, %v517
    %v560 = vmul.f32 %v559, %v558
    %v561 = vmul.f32 0.5, %v560
    %v562 = vsub.f32 1.5, %v561
    %v563 = vmul.f32 %v558, %v562
    %vm564 = vweird.f32 %v517
    %vm565 = vweird.f32 %v558
    %vm566 = vmor %vm564, %vm565
    %v567 = vsel %vm566, %v558, %v563
    %v568 = vrsqrt.pop %v518
    %v569 = vmul.f32 %v568, %v518
    %v570 = vmul.f32 %v569, %v568
    %v571 = vmul.f32 0.5, %v570
    %v572 = vsub.f32 1.5, %v571
    %v573 = vmul.f32 %v568, %v572
    %vm574 = vweird.f32 %v518
    %vm575 = vweird.f32 %v568
    %vm576 = vmor %vm574, %vm575
    %v577 = vsel %vm576, %v568, %v573
    %v578 = vrsqrt.pop %v519
    %v579 = vmul.f32 %v578, %v519
    %v580 = vmul.f32 %v579, %v578
    %v581 = vmul.f32 0.5, %v580
    %v582 = vsub.f32 1.5, %v581
    %v583 = vmul.f32 %v578, %v582
    %vm584 = vweird.f32 %v519
    %vm585 = vweird.f32 %v578
    %vm586 = vmor %vm584, %vm585
    %v587 = vsel %vm586, %v578, %v583
    %v588 = vrsqrt.pop %v520
    %v589 = vmul.f32 %v588, %v520
    %v590 = vmul.f32 %v589, %v588
    %v591 = vmul.f32 0.5, %v590
    %v592 = vsub.f32 1.5, %v591
    %v593 = vmul.f32 %v588, %v592
    %vm594 = vweird.f32 %v520
    %vm595 = vweird.f32 %v588
    %vm596 = vmor %vm594, %vm595
    %v597 = vsel %vm596, %v588, %v593
    %v598 = vrsqrt.pop %v521
    %v599 = vmul.f32 %v598, %v521
    %v600 = vmul.f32 %v599, %v598
    %v601 = vmul.f32 0.5, %v600
    %v602 = vsub.f32 1.5, %v601
    %v603 = vmul.f32 %v598, %v602
    %vm604 = vweird.f32 %v521
    %vm605 = vweird.f32 %v598
    %vm606 = vmor %vm604, %vm605
    %v607 = vsel %vm606, %v598, %v603
    %v608 = vrsqrt.pop %v522
    %v609 = vmul.f32 %v608, %v522
    %v610 = vmul.f32 %v609, %v608
    %v611 = vmul.f32 0.5, %v610
    %v612 = vsub.f32 1.5, %v611
    %v613 = vmul.f32 %v608, %v612
    %vm614 = vweird.f32 %v522
    %vm615 = vweird.f32 %v608
    %vm616 = vmor %vm614, %vm615
    %v617 = vsel %vm616, %v608, %v613
    %v618 = vrsqrt.pop %v523
    %v619 = vmul.f32 %v618, %v523
    %v620 = vmul.f32 %v619, %v618
    %v621 = vmul.f32 0.5, %v620
    %v622 = vsub.f32 1.5, %v621
    %v623 = vmul.f32 %v618, %v622
    %vm624 = vweird.f32 %v523
    %vm625 = vweird.f32 %v618
    %vm626 = vmor %vm624, %vm625
    %v627 = vsel %vm626, %v618, %v623
    %v628 = vrsqrt.pop %v524
    %v629 = vmul.f32 %v628, %v524
    %v630 = vmul.f32 %v629, %v628
    %v631 = vmul.f32 0.5, %v630
    %v632 = vsub.f32 1.5, %v631
    %v633 = vmul.f32 %v628, %v632
    %vm634 = vweird.f32 %v524
    %vm635 = vweird.f32 %v628
    %vm636 = vmor %vm634, %vm635
    %v637 = vsel %vm636, %v628, %v633
    %v638 = vrsqrt.pop %v525
    %v639 = vmul.f32 %v638, %v525
    %v640 = vmul.f32 %v639, %v638
    %v641 = vmul.f32 0.5, %v640
    %v642 = vsub.f32 1.5, %v641
    %v643 = vmul.f32 %v638, %v642
    %vm644 = vweird.f32 %v525
    %vm645 = vweird.f32 %v638
    %vm646 = vmor %vm644, %vm645
    %v647 = vsel %vm646, %v638, %v643
    %v648 = vrsqrt.pop %v526
    %v649 = vmul.f32 %v648, %v526
    %v650 = vmul.f32 %v649, %v648
    %v651 = vmul.f32 0.5, %v650
    %v652 = vsub.f32 1.5, %v651
    %v653 = vmul.f32 %v648, %v652
    %vm654 = vweird.f32 %v526
    %vm655 = vweird.f32 %v648
    %vm656 = vmor %vm654, %vm655
    %v657 = vsel %vm656, %v648, %v653
    %v658 = vrsqrt.pop %v527
    %v659 = vmul.f32 %v658, %v527
    %v660 = vmul.f32 %v659, %v658
    %v661 = vmul.f32 0.5, %v660
    %v662 = vsub.f32 1.5, %v661
    %v663 = vmul.f32 %v658, %v662
    %vm664 = vweird.f32 %v527
    %vm665 = vweird.f32 %v658
    %vm666 = vmor %vm664, %vm665
    %v667 = vsel %vm666, %v658, %v663
    %v668 = vrsqrt.pop %v528
    %v669 = vmul.f32 %v668, %v528
    %v670 = vmul.f32 %v669, %v668
    %v671 = vmul.f32 0.5, %v670
    %v672 = vsub.f32 1.5, %v671
    %v673 = vmul.f32 %v668, %v672
    %vm674 = vweird.f32 %v528
    %vm675 = vweird.f32 %v668
    %vm676 = vmor %vm674, %vm675
    %v677 = vsel %vm676, %v668, %v673
    %v678 = vrsqrt.pop %v529
    %v679 = vmul.f32 %v678, %v529
    %v680 = vmul.f32 %v679, %v678
    %v681 = vmul.f32 0.5, %v680
    %v682 = vsub.f32 1.5, %v681
    %v683 = vmul.f32 %v678, %v682
    %vm684 = vweird.f32 %v529
    %vm685 = vweird.f32 %v678
    %vm686 = vmor %vm684, %vm685
    %v687 = vsel %vm686, %v678, %v683
    %v688 = vrsqrt.pop %v530
    %v689 = vmul.f32 %v688, %v530
    %v690 = vmul.f32 %v689, %v688
    %v691 = vmul.f32 0.5, %v690
    %v692 = vsub.f32 1.5, %v691
    %v693 = vmul.f32 %v688, %v692
    %vm694 = vweird.f32 %v530
    %vm695 = vweird.f32 %v688
    %vm696 = vmor %vm694, %vm695
    %v697 = vsel %vm696, %v688, %v693
    %v698 = vrsqrt.pop %v531
    %v699 = vmul.f32 %v698, %v531
    %v700 = vmul.f32 %v699, %v698
    %v701 = vmul.f32 0.5, %v700
    %v702 = vsub.f32 1.5, %v701
    %v703 = vmul.f32 %v698, %v702
    %vm704 = vweird.f32 %v531
    %vm705 = vweird.f32 %v698
    %vm706 = vmor %vm704, %vm705
    %v707 = vsel %vm706, %v698, %v703
    %v708 = vrsqrt.pop %v532
    %v709 = vmul.f32 %v708, %v532
    %v710 = vmul.f32 %v709, %v708
    %v711 = vmul.f32 0.5, %v710
    %v712 = vsub.f32 1.5, %v711
    %v713 = vmul.f32 %v708, %v712
    %vm714 = vweird.f32 %v532
    %vm715 = vweird.f32 %v708
    %vm716 = vmor %vm714, %vm715
    %v717 = vsel %vm716, %v708, %v713
    %v718 = vrsqrt.pop %v533
    %v719 = vmul.f32 %v718, %v533
    %v720 = vmul.f32 %v719, %v718
    %v721 = vmul.f32 0.5, %v720
    %v722 = vsub.f32 1.5, %v721
    %v723 = vmul.f32 %v718, %v722
    %vm724 = vweird.f32 %v533
    %vm725 = vweird.f32 %v718
    %vm726 = vmor %vm724, %vm725
    %v727 = vsel %vm726, %v718, %v723
    %v728 = vrsqrt.pop %v534
    %v729 = vmul.f32 %v728, %v534
    %v730 = vmul.f32 %v729, %v728
    %v731 = vmul.f32 0.5, %v730
    %v732 = vsub.f32 1.5, %v731
    %v733 = vmul.f32 %v728, %v732
    %vm734 = vweird.f32 %v534
    %vm735 = vweird.f32 %v728
    %vm736 = vmor %vm734, %vm735
    %v737 = vsel %vm736, %v728, %v733
    %v738 = vrsqrt.pop %v535
    %v739 = vmul.f32 %v738, %v535
    %v740 = vmul.f32 %v739, %v738
    %v741 = vmul.f32 0.5, %v740
    %v742 = vsub.f32 1.5, %v741
    %v743 = vmul.f32 %v738, %v742
    %vm744 = vweird.f32 %v535
    %vm745 = vweird.f32 %v738
    %vm746 = vmor %vm744, %vm745
    %v747 = vsel %vm746, %v738, %v743
    %v748 = vrsqrt.pop %v536
    %v749 = vmul.f32 %v748, %v536
    %v750 = vmul.f32 %v749, %v748
    %v751 = vmul.f32 0.5, %v750
    %v752 = vsub.f32 1.5, %v751
    %v753 = vmul.f32 %v748, %v752
    %vm754 = vweird.f32 %v536
    %vm755 = vweird.f32 %v748
    %vm756 = vmor %vm754, %vm755
    %v757 = vsel %vm756, %v748, %v753
    %v758 = vrsqrt.pop %v537
    %v759 = vmul.f32 %v758, %v537
    %v760 = vmul.f32 %v759, %v758
    %v761 = vmul.f32 0.5, %v760
    %v762 = vsub.f32 1.5, %v761
    %v763 = vmul.f32 %v758, %v762
    %vm764 = vweird.f32 %v537
    %vm765 = vweird.f32 %v758
    %vm766 = vmor %vm764, %vm765
    %v767 = vsel %vm766, %v758, %v763
    %v768 = vrsqrt.pop %v538
    %v769 = vmul.f32 %v768, %v538
    %v770 = vmul.f32 %v769, %v768
    %v771 = vmul.f32 0.5, %v770
    %v772 = vsub.f32 1.5, %v771
    %v773 = vmul.f32 %v768, %v772
    %vm774 = vweird.f32 %v538
    %vm775 = vweird.f32 %v768
    %vm776 = vmor %vm774, %vm775
    %v777 = vsel %vm776, %v768, %v773
    %v778 = vrsqrt.pop %v539
    %v779 = vmul.f32 %v778, %v539
    %v780 = vmul.f32 %v779, %v778
    %v781 = vmul.f32 0.5, %v780
    %v782 = vsub.f32 1.5, %v781
    %v783 = vmul.f32 %v778, %v782
    %vm784 = vweird.f32 %v539
    %vm785 = vweird.f32 %v778
    %vm786 = vmor %vm784, %vm785
    %v787 = vsel %vm786, %v778, %v783
    %v788 = vrsqrt.pop %v540
    %v789 = vmul.f32 %v788, %v540
    %v790 = vmul.f32 %v789, %v788
    %v791 = vmul.f32 0.5, %v790
    %v792 = vsub.f32 1.5, %v791
    %v793 = vmul.f32 %v788, %v792
    %vm794 = vweird.f32 %v540
    %vm795 = vweird.f32 %v788
    %vm796 = vmor %vm794, %vm795
    %v797 = vsel %vm796, %v788, %v793
    %v798 = vrsqrt.pop %v541
    %v799 = vmul.f32 %v798, %v541
    %v800 = vmul.f32 %v799, %v798
    %v801 = vmul.f32 0.5, %v800
    %v802 = vsub.f32 1.5, %v801
    %v803 = vmul.f32 %v798, %v802
    %vm804 = vweird.f32 %v541
    %vm805 = vweird.f32 %v798
    %vm806 = vmor %vm804, %vm805
    %v807 = vsel %vm806, %v798, %v803
    %v808 = vrsqrt.pop %v542
    %v809 = vmul.f32 %v808, %v542
    %v810 = vmul.f32 %v809, %v808
    %v811 = vmul.f32 0.5, %v810
    %v812 = vsub.f32 1.5, %v811
    %v813 = vmul.f32 %v808, %v812
    %vm814 = vweird.f32 %v542
    %vm815 = vweird.f32 %v808
    %vm816 = vmor %vm814, %vm815
    %v817 = vsel %vm816, %v808, %v813
    %v818 = vrsqrt.pop %v543
    %v819 = vmul.f32 %v818, %v543
    %v820 = vmul.f32 %v819, %v818
    %v821 = vmul.f32 0.5, %v820
    %v822 = vsub.f32 1.5, %v821
    %v823 = vmul.f32 %v818, %v822
    %vm824 = vweird.f32 %v543
    %vm825 = vweird.f32 %v818
    %vm826 = vmor %vm824, %vm825
    %v827 = vsel %vm826, %v818, %v823
    %v828 = vrsqrt.pop %v544
    %v829 = vmul.f32 %v828, %v544
    %v830 = vmul.f32 %v829, %v828
    %v831 = vmul.f32 0.5, %v830
    %v832 = vsub.f32 1.5, %v831
    %v833 = vmul.f32 %v828, %v832
    %vm834 = vweird.f32 %v544
    %vm835 = vweird.f32 %v828
    %vm836 = vmor %vm834, %vm835
    %v837 = vsel %vm836, %v828, %v833
    %v838 = vrsqrt.pop %v545
    %v839 = vmul.f32 %v838, %v545
    %v840 = vmul.f32 %v839, %v838
    %v841 = vmul.f32 0.5, %v840
    %v842 = vsub.f32 1.5, %v841
    %v843 = vmul.f32 %v838, %v842
    %vm844 = vweird.f32 %v545
    %vm845 = vweird.f32 %v838
    %vm846 = vmor %vm844, %vm845
    %v847 = vsel %vm846, %v838, %v843
    %v848 = vrsqrt.pop %v546
    %v849 = vmul.f32 %v848, %v546
    %v850 = vmul.f32 %v849, %v848
    %v851 = vmul.f32 0.5, %v850
    %v852 = vsub.f32 1.5, %v851
    %v853 = vmul.f32 %v848, %v852
    %vm854 = vweird.f32 %v546
    %vm855 = vweird.f32 %v848
    %vm856 = vmor %vm854, %vm855
    %v857 = vsel %vm856, %v848, %v853
    %v858 = vrsqrt.pop %v547
    %v859 = vmul.f32 %v858, %v547
    %v860 = vmul.f32 %v859, %v858
    %v861 = vmul.f32 0.5, %v860
    %v862 = vsub.f32 1.5, %v861
    %v863 = vmul.f32 %v858, %v862
    %vm864 = vweird.f32 %v547
    %vm865 = vweird.f32 %v858
    %vm866 = vmor %vm864, %vm865
    %v867 = vsel %vm866, %v858, %v863
    %v868 = vmul.f32 %v356, %v557
    %v869 = vmul.f32 %v357, %v567
    %v870 = vmul.f32 %v358, %v577
    %v871 = vmul.f32 %v359, %v587
    %v872 = vmul.f32 %v360, %v597
    %v873 = vmul.f32 %v361, %v607
    %v874 = vmul.f32 %v362, %v617
    %v875 = vmul.f32 %v363, %v627
    %v876 = vmul.f32 %v364, %v637
    %v877 = vmul.f32 %v365, %v647
    %v878 = vmul.f32 %v366, %v657
    %v879 = vmul.f32 %v367, %v667
    %v880 = vmul.f32 %v368, %v677
    %v881 = vmul.f32 %v369, %v687
    %v882 = vmul.f32 %v370, %v697
    %v883 = vmul.f32 %v371, %v707
    %v884 = vmul.f32 %v372, %v717
    %v885 = vmul.f32 %v373, %v727
    %v886 = vmul.f32 %v374, %v737
    %v887 = vmul.f32 %v375, %v747
    %v888 = vmul.f32 %v376, %v757
    %v889 = vmul.f32 %v377, %v767
    %v890 = vmul.f32 %v378, %v777
    %v891 = vmul.f32 %v379, %v787
    %v892 = vmul.f32 %v380, %v797
    %v893 = vmul.f32 %v381, %v807
    %v894 = vmul.f32 %v382, %v817
    %v895 = vmul.f32 %v383, %v827
    %v896 = vmul.f32 %v384, %v837
    %v897 = vmul.f32 %v385, %v847
    %v898 = vmul.f32 %v386, %v857
    %v899 = vmul.f32 %v387, %v867
    %v900 = vperm.slane %v60, 1
    %v901 = vmul.f32 %v868, %v900
    %v902 = vmul.f32 %v869, %v900
    %v903 = vmul.f32 %v870, %v900
    %v904 = vmul.f32 %v871, %v900
    %v905 = vmul.f32 %v872, %v900
    %v906 = vmul.f32 %v873, %v900
    %v907 = vmul.f32 %v874, %v900
    %v908 = vmul.f32 %v875, %v900
    %v909 = vmul.f32 %v876, %v900
    %v910 = vmul.f32 %v877, %v900
    %v911 = vmul.f32 %v878, %v900
    %v912 = vmul.f32 %v879, %v900
    %v913 = vmul.f32 %v880, %v900
    %v914 = vmul.f32 %v881, %v900
    %v915 = vmul.f32 %v882, %v900
    %v916 = vmul.f32 %v883, %v900
    %v917 = vmul.f32 %v884, %v900
    %v918 = vmul.f32 %v885, %v900
    %v919 = vmul.f32 %v886, %v900
    %v920 = vmul.f32 %v887, %v900
    %v921 = vmul.f32 %v888, %v900
    %v922 = vmul.f32 %v889, %v900
    %v923 = vmul.f32 %v890, %v900
    %v924 = vmul.f32 %v891, %v900
    %v925 = vmul.f32 %v892, %v900
    %v926 = vmul.f32 %v893, %v900
    %v927 = vmul.f32 %v894, %v900
    %v928 = vmul.f32 %v895, %v900
    %v929 = vmul.f32 %v896, %v900
    %v930 = vmul.f32 %v897, %v900
    %v931 = vmul.f32 %v898, %v900
    %v932 = vmul.f32 %v899, %v900
    %v933 = vperm.slane %v60, 2
    %v934 = vadd.f32 %v901, %v933
    %v935 = vadd.f32 %v902, %v933
    %v936 = vadd.f32 %v903, %v933
    %v937 = vadd.f32 %v904, %v933
    %v938 = vadd.f32 %v905, %v933
    %v939 = vadd.f32 %v906, %v933
    %v940 = vadd.f32 %v907, %v933
    %v941 = vadd.f32 %v908, %v933
    %v942 = vadd.f32 %v909, %v933
    %v943 = vadd.f32 %v910, %v933
    %v944 = vadd.f32 %v911, %v933
    %v945 = vadd.f32 %v912, %v933
    %v946 = vadd.f32 %v913, %v933
    %v947 = vadd.f32 %v914, %v933
    %v948 = vadd.f32 %v915, %v933
    %v949 = vadd.f32 %v916, %v933
    %v950 = vadd.f32 %v917, %v933
    %v951 = vadd.f32 %v918, %v933
    %v952 = vadd.f32 %v919, %v933
    %v953 = vadd.f32 %v920, %v933
    %v954 = vadd.f32 %v921, %v933
    %v955 = vadd.f32 %v922, %v933
    %v956 = vadd.f32 %v923, %v933
    %v957 = vadd.f32 %v924, %v933
    %v958 = vadd.f32 %v925, %v933
    %v959 = vadd.f32 %v926, %v933
    %v960 = vadd.f32 %v927, %v933
    %v961 = vadd.f32 %v928, %v933
    %v962 = vadd.f32 %v929, %v933
    %v963 = vadd.f32 %v930, %v933
    %v964 = vadd.f32 %v931, %v933
    %v965 = vadd.f32 %v932, %v933
    %v966 = vmax.f32 %v934, 0.0
    %v967 = vmax.f32 %v935, 0.0
    %v968 = vmax.f32 %v936, 0.0
    %v969 = vmax.f32 %v937, 0.0
    %v970 = vmax.f32 %v938, 0.0
    %v971 = vmax.f32 %v939, 0.0
    %v972 = vmax.f32 %v940, 0.0
    %v973 = vmax.f32 %v941, 0.0
    %v974 = vmax.f32 %v942, 0.0
    %v975 = vmax.f32 %v943, 0.0
    %v976 = vmax.f32 %v944, 0.0
    %v977 = vmax.f32 %v945, 0.0
    %v978 = vmax.f32 %v946, 0.0
    %v979 = vmax.f32 %v947, 0.0
    %v980 = vmax.f32 %v948, 0.0
    %v981 = vmax.f32 %v949, 0.0
    %v982 = vmax.f32 %v950, 0.0
    %v983 = vmax.f32 %v951, 0.0
    %v984 = vmax.f32 %v952, 0.0
    %v985 = vmax.f32 %v953, 0.0
    %v986 = vmax.f32 %v954, 0.0
    %v987 = vmax.f32 %v955, 0.0
    %v988 = vmax.f32 %v956, 0.0
    %v989 = vmax.f32 %v957, 0.0
    %v990 = vmax.f32 %v958, 0.0
    %v991 = vmax.f32 %v959, 0.0
    %v992 = vmax.f32 %v960, 0.0
    %v993 = vmax.f32 %v961, 0.0
    %v994 = vmax.f32 %v962, 0.0
    %v995 = vmax.f32 %v963, 0.0
    %v996 = vmax.f32 %v964, 0.0
    %v997 = vmax.f32 %v965, 0.0
    %v998 = vld [vmem:[#allocation5 + $0x80] sm:$0xff]
    %v999 = vld [vmem:[#allocation5 + $0x88] sm:$0xff]
    %v1000 = vld [vmem:[#allocation5 + $0x90] sm:$0xff]
    %v1001 = vld [vmem:[#allocation5 + $0x98] sm:$0xff]
    %v1002 = vld [vmem:[#allocation5 + $0xa0] sm:$0xff]
    %v1003 = vld [vmem:[#allocation5 + $0xa8] sm:$0xff]
    %v1004 = vld [vmem:[#allocation5 + $0xb0] sm:$0xff]
    %v1005 = vld [vmem:[#allocation5 + $0xb8] sm:$0xff]
    %v1006 = vld [vmem:[#allocation5 + $0xc0] sm:$0xff]
    %v1007 = vld [vmem:[#allocation5 + $0xc8] sm:$0xff]
    %v1008 = vld [vmem:[#allocation5 + $0xd0] sm:$0xff]
    %v1009 = vld [vmem:[#allocation5 + $0xd8] sm:$0xff]
    %v1010 = vld [vmem:[#allocation5 + $0xe0] sm:$0xff]
    %v1011 = vld [vmem:[#allocation5 + $0xe8] sm:$0xff]
    %v1012 = vld [vmem:[#allocation5 + $0xf0] sm:$0xff]
    %v1013 = vld [vmem:[#allocation5 + $0xf8] sm:$0xff]
    %v1014 = vperm.slane %v60, 3
    %1015 = vmatpush.msra.mxu0 %v1013
    %1016 = vmatpush.msra.mxu0 %v1012
    %1017 = vmatpush.msra.mxu0 %v1011
    %1018 = vmatpush.msra.mxu0 %v1010
    %1019 = vmatpush.msra.mxu0 %v1009
    %1020 = vmatpush.msra.mxu0 %v1008
    %1021 = vmatpush.msra.mxu0 %v1007
    %1022 = vmatpush.msra.mxu0 %v1006
    %1023 = vmatpush.msra.mxu0 %v1005
    %1024 = vmatpush.msra.mxu0 %v1004
    %1025 = vmatpush.msra.mxu0 %v1003
    %1026 = vmatpush.msra.mxu0 %v1002
    %1027 = vmatpush.msra.mxu0 %v1001
    %1028 = vmatpush.msra.mxu0 %v1000
    %1029 = vmatpush.msra.mxu0 %v999
    %1030 = vmatpush.msra.mxu0 %v998
    %1031 = vmatmul.f32.gmra.mxu0 %v966
    %v1032 = vpop.f32.mrf.mxu0
    %v1033 = vadd.f32 %v1014, %v1032
    %1034 = vmatmul.f32.gmra.mxu0 %v967
    %v1035 = vpop.f32.mrf.mxu0
    %v1036 = vadd.f32 %v1014, %v1035
    %1037 = vmatmul.f32.gmra.mxu0 %v968
    %v1038 = vpop.f32.mrf.mxu0
    %v1039 = vadd.f32 %v1014, %v1038
    %1040 = vmatmul.f32.gmra.mxu0 %v969
    %v1041 = vpop.f32.mrf.mxu0
    %v1042 = vadd.f32 %v1014, %v1041
    %1043 = vmatmul.f32.gmra.mxu0 %v970
    %v1044 = vpop.f32.mrf.mxu0
    %v1045 = vadd.f32 %v1014, %v1044
    %1046 = vmatmul.f32.gmra.mxu0 %v971
    %v1047 = vpop.f32.mrf.mxu0
    %v1048 = vadd.f32 %v1014, %v1047
    %1049 = vmatmul.f32.gmra.mxu0 %v972
    %v1050 = vpop.f32.mrf.mxu0
    %v1051 = vadd.f32 %v1014, %v1050
    %1052 = vmatmul.f32.gmra.mxu0 %v973
    %v1053 = vpop.f32.mrf.mxu0
    %v1054 = vadd.f32 %v1014, %v1053
    %1055 = vmatmul.f32.gmra.mxu0 %v974
    %v1056 = vpop.f32.mrf.mxu0
    %v1057 = vadd.f32 %v1014, %v1056
    %1058 = vmatmul.f32.gmra.mxu0 %v975
    %v1059 = vpop.f32.mrf.mxu0
    %v1060 = vadd.f32 %v1014, %v1059
    %1061 = vmatmul.f32.gmra.mxu0 %v976
    %v1062 = vpop.f32.mrf.mxu0
    %v1063 = vadd.f32 %v1014, %v1062
    %1064 = vmatmul.f32.gmra.mxu0 %v977
    %v1065 = vpop.f32.mrf.mxu0
    %v1066 = vadd.f32 %v1014, %v1065
    %1067 = vmatmul.f32.gmra.mxu0 %v978
    %v1068 = vpop.f32.mrf.mxu0
    %v1069 = vadd.f32 %v1014, %v1068
    %1070 = vmatmul.f32.gmra.mxu0 %v979
    %v1071 = vpop.f32.mrf.mxu0
    %v1072 = vadd.f32 %v1014, %v1071
    %1073 = vmatmul.f32.gmra.mxu0 %v980
    %v1074 = vpop.f32.mrf.mxu0
    %v1075 = vadd.f32 %v1014, %v1074
    %1076 = vmatmul.f32.gmra.mxu0 %v981
    %v1077 = vpop.f32.mrf.mxu0
    %v1078 = vadd.f32 %v1014, %v1077
    %1079 = vmatmul.f32.gmra.mxu0 %v982
    %v1080 = vpop.f32.mrf.mxu0
    %v1081 = vadd.f32 %v1014, %v1080
    %1082 = vmatmul.f32.gmra.mxu0 %v983
    %v1083 = vpop.f32.mrf.mxu0
    %v1084 = vadd.f32 %v1014, %v1083
    %1085 = vmatmul.f32.gmra.mxu0 %v984
    %v1086 = vpop.f32.mrf.mxu0
    %v1087 = vadd.f32 %v1014, %v1086
    %1088 = vmatmul.f32.gmra.mxu0 %v985
    %v1089 = vpop.f32.mrf.mxu0
    %v1090 = vadd.f32 %v1014, %v1089
    %1091 = vmatmul.f32.gmra.mxu0 %v986
    %v1092 = vpop.f32.mrf.mxu0
    %v1093 = vadd.f32 %v1014, %v1092
    %1094 = vmatmul.f32.gmra.mxu0 %v987
    %v1095 = vpop.f32.mrf.mxu0
    %v1096 = vadd.f32 %v1014, %v1095
    %1097 = vmatmul.f32.gmra.mxu0 %v988
    %v1098 = vpop.f32.mrf.mxu0
    %v1099 = vadd.f32 %v1014, %v1098
    %1100 = vmatmul.f32.gmra.mxu0 %v989
    %v1101 = vpop.f32.mrf.mxu0
    %v1102 = vadd.f32 %v1014, %v1101
    %1103 = vmatmul.f32.gmra.mxu0 %v990
    %v1104 = vpop.f32.mrf.mxu0
    %v1105 = vadd.f32 %v1014, %v1104
    %1106 = vmatmul.f32.gmra.mxu0 %v991
    %v1107 = vpop.f32.mrf.mxu0
    %v1108 = vadd.f32 %v1014, %v1107
    %1109 = vmatmul.f32.gmra.mxu0 %v992
    %v1110 = vpop.f32.mrf.mxu0
    %v1111 = vadd.f32 %v1014, %v1110
    %1112 = vmatmul.f32.gmra.mxu0 %v993
    %v1113 = vpop.f32.mrf.mxu0
    %v1114 = vadd.f32 %v1014, %v1113
    %1115 = vmatmul.f32.gmra.mxu0 %v994
    %v1116 = vpop.f32.mrf.mxu0
    %v1117 = vadd.f32 %v1014, %v1116
    %1118 = vmatmul.f32.gmra.mxu0 %v995
    %v1119 = vpop.f32.mrf.mxu0
    %v1120 = vadd.f32 %v1014, %v1119
    %1121 = vmatmul.f32.gmra.mxu0 %v996
    %v1122 = vpop.f32.mrf.mxu0
    %v1123 = vadd.f32 %v1014, %v1122
    %1124 = vmatmul.f32.gmra.mxu0 %v997
    %v1125 = vpop.f32.mrf.mxu0
    %v1126 = vadd.f32 %v1014, %v1125
    %1127 = vdwg.mxu0
    %1128 = vadd.xlane.f32.xlu0 %v1033
    %v1129 = vpop.xlane.xlu0 %1128
    %1130 = vadd.xlane.f32.xlu0 %v1036
    %v1131 = vpop.xlane.xlu0 %1130
    %1132 = vadd.xlane.f32.xlu0 %v1039
    %v1133 = vpop.xlane.xlu0 %1132
    %1134 = vadd.xlane.f32.xlu0 %v1042
    %v1135 = vpop.xlane.xlu0 %1134
    %1136 = vadd.xlane.f32.xlu0 %v1045
    %v1137 = vpop.xlane.xlu0 %1136
    %1138 = vadd.xlane.f32.xlu0 %v1048
    %v1139 = vpop.xlane.xlu0 %1138
    %1140 = vadd.xlane.f32.xlu0 %v1051
    %v1141 = vpop.xlane.xlu0 %1140
    %1142 = vadd.xlane.f32.xlu0 %v1054
    %v1143 = vpop.xlane.xlu0 %1142
    %1144 = vadd.xlane.f32.xlu0 %v1057
    %v1145 = vpop.xlane.xlu0 %1144
    %1146 = vadd.xlane.f32.xlu0 %v1060
    %v1147 = vpop.xlane.xlu0 %1146
    %1148 = vadd.xlane.f32.xlu0 %v1063
    %v1149 = vpop.xlane.xlu0 %1148
    %1150 = vadd.xlane.f32.xlu0 %v1066
    %v1151 = vpop.xlane.xlu0 %1150
    %1152 = vadd.xlane.f32.xlu0 %v1069
    %v1153 = vpop.xlane.xlu0 %1152
    %1154 = vadd.xlane.f32.xlu0 %v1072
    %v1155 = vpop.xlane.xlu0 %1154
    %1156 = vadd.xlane.f32.xlu0 %v1075
    %v1157 = vpop.xlane.xlu0 %1156
    %1158 = vadd.xlane.f32.xlu0 %v1078
    %v1159 = vpop.xlane.xlu0 %1158
    %1160 = vadd.xlane.f32.xlu0 %v1081
    %v1161 = vpop.xlane.xlu0 %1160
    %1162 = vadd.xlane.f32.xlu0 %v1084
    %v1163 = vpop.xlane.xlu0 %1162
    %1164 = vadd.xlane.f32.xlu0 %v1087
    %v1165 = vpop.xlane.xlu0 %1164
    %1166 = vadd.xlane.f32.xlu0 %v1090
    %v1167 = vpop.xlane.xlu0 %1166
    %1168 = vadd.xlane.f32.xlu0 %v1093
    %v1169 = vpop.xlane.xlu0 %1168
    %1170 = vadd.xlane.f32.xlu0 %v1096
    %v1171 = vpop.xlane.xlu0 %1170
    %1172 = vadd.xlane.f32.xlu0 %v1099
    %v1173 = vpop.xlane.xlu0 %1172
    %1174 = vadd.xlane.f32.xlu0 %v1102
    %v1175 = vpop.xlane.xlu0 %1174
    %1176 = vadd.xlane.f32.xlu0 %v1105
    %v1177 = vpop.xlane.xlu0 %1176
    %1178 = vadd.xlane.f32.xlu0 %v1108
    %v1179 = vpop.xlane.xlu0 %1178
    %1180 = vadd.xlane.f32.xlu0 %v1111
    %v1181 = vpop.xlane.xlu0 %1180
    %1182 = vadd.xlane.f32.xlu0 %v1114
    %v1183 = vpop.xlane.xlu0 %1182
    %1184 = vadd.xlane.f32.xlu0 %v1117
    %v1185 = vpop.xlane.xlu0 %1184
    %1186 = vadd.xlane.f32.xlu0 %v1120
    %v1187 = vpop.xlane.xlu0 %1186
    %1188 = vadd.xlane.f32.xlu0 %v1123
    %v1189 = vpop.xlane.xlu0 %1188
    %1190 = vadd.xlane.f32.xlu0 %v1126
    %v1191 = vpop.xlane.xlu0 %1190
    %v1192 = vmul.f32 %v1129, 0.03125
    %v1193 = vmul.f32 %v1131, 0.03125
    %v1194 = vmul.f32 %v1133, 0.03125
    %v1195 = vmul.f32 %v1135, 0.03125
    %v1196 = vmul.f32 %v1137, 0.03125
    %v1197 = vmul.f32 %v1139, 0.03125
    %v1198 = vmul.f32 %v1141, 0.03125
    %v1199 = vmul.f32 %v1143, 0.03125
    %v1200 = vmul.f32 %v1145, 0.03125
    %v1201 = vmul.f32 %v1147, 0.03125
    %v1202 = vmul.f32 %v1149, 0.03125
    %v1203 = vmul.f32 %v1151, 0.03125
    %v1204 = vmul.f32 %v1153, 0.03125
    %v1205 = vmul.f32 %v1155, 0.03125
    %v1206 = vmul.f32 %v1157, 0.03125
    %v1207 = vmul.f32 %v1159, 0.03125
    %v1208 = vmul.f32 %v1161, 0.03125
    %v1209 = vmul.f32 %v1163, 0.03125
    %v1210 = vmul.f32 %v1165, 0.03125
    %v1211 = vmul.f32 %v1167, 0.03125
    %v1212 = vmul.f32 %v1169, 0.03125
    %v1213 = vmul.f32 %v1171, 0.03125
    %v1214 = vmul.f32 %v1173, 0.03125
    %v1215 = vmul.f32 %v1175, 0.03125
    %v1216 = vmul.f32 %v1177, 0.03125
    %v1217 = vmul.f32 %v1179, 0.03125
    %v1218 = vmul.f32 %v1181, 0.03125
    %v1219 = vmul.f32 %v1183, 0.03125
    %v1220 = vmul.f32 %v1185, 0.03125
    %v1221 = vmul.f32 %v1187, 0.03125
    %v1222 = vmul.f32 %v1189, 0.03125
    %v1223 = vmul.f32 %v1191, 0.03125
    %v1224 = vsub.f32 %v1033, %v1192
    %v1225 = vsub.f32 %v1036, %v1193
    %v1226 = vsub.f32 %v1039, %v1194
    %v1227 = vsub.f32 %v1042, %v1195
    %v1228 = vsub.f32 %v1045, %v1196
    %v1229 = vsub.f32 %v1048, %v1197
    %v1230 = vsub.f32 %v1051, %v1198
    %v1231 = vsub.f32 %v1054, %v1199
    %v1232 = vsub.f32 %v1057, %v1200
    %v1233 = vsub.f32 %v1060, %v1201
    %v1234 = vsub.f32 %v1063, %v1202
    %v1235 = vsub.f32 %v1066, %v1203
    %v1236 = vsub.f32 %v1069, %v1204
    %v1237 = vsub.f32 %v1072, %v1205
    %v1238 = vsub.f32 %v1075, %v1206
    %v1239 = vsub.f32 %v1078, %v1207
    %v1240 = vsub.f32 %v1081, %v1208
    %v1241 = vsub.f32 %v1084, %v1209
    %v1242 = vsub.f32 %v1087, %v1210
    %v1243 = vsub.f32 %v1090, %v1211
    %v1244 = vsub.f32 %v1093, %v1212
    %v1245 = vsub.f32 %v1096, %v1213
    %v1246 = vsub.f32 %v1099, %v1214
    %v1247 = vsub.f32 %v1102, %v1215
    %v1248 = vsub.f32 %v1105, %v1216
    %v1249 = vsub.f32 %v1108, %v1217
    %v1250 = vsub.f32 %v1111, %v1218
    %v1251 = vsub.f32 %v1114, %v1219
    %v1252 = vsub.f32 %v1117, %v1220
    %v1253 = vsub.f32 %v1120, %v1221
    %v1254 = vsub.f32 %v1123, %v1222
    %v1255 = vsub.f32 %v1126, %v1223
    %v1256 = vsel %vm355, %v1224, 0.0
    %v1257 = vsel %vm355, %v1225, 0.0
    %v1258 = vsel %vm355, %v1226, 0.0
    %v1259 = vsel %vm355, %v1227, 0.0
    %v1260 = vsel %vm355, %v1228, 0.0
    %v1261 = vsel %vm355, %v1229, 0.0
    %v1262 = vsel %vm355, %v1230, 0.0
    %v1263 = vsel %vm355, %v1231, 0.0
    %v1264 = vsel %vm355, %v1232, 0.0
    %v1265 = vsel %vm355, %v1233, 0.0
    %v1266 = vsel %vm355, %v1234, 0.0
    %v1267 = vsel %vm355, %v1235, 0.0
    %v1268 = vsel %vm355, %v1236, 0.0
    %v1269 = vsel %vm355, %v1237, 0.0
    %v1270 = vsel %vm355, %v1238, 0.0
    %v1271 = vsel %vm355, %v1239, 0.0
    %v1272 = vsel %vm355, %v1240, 0.0
    %v1273 = vsel %vm355, %v1241, 0.0
    %v1274 = vsel %vm355, %v1242, 0.0
    %v1275 = vsel %vm355, %v1243, 0.0
    %v1276 = vsel %vm355, %v1244, 0.0
    %v1277 = vsel %vm355, %v1245, 0.0
    %v1278 = vsel %vm355, %v1246, 0.0
    %v1279 = vsel %vm355, %v1247, 0.0
    %v1280 = vsel %vm355, %v1248, 0.0
    %v1281 = vsel %vm355, %v1249, 0.0
    %v1282 = vsel %vm355, %v1250, 0.0
    %v1283 = vsel %vm355, %v1251, 0.0
    %v1284 = vsel %vm355, %v1252, 0.0
    %v1285 = vsel %vm355, %v1253, 0.0
    %v1286 = vsel %vm355, %v1254, 0.0
    %v1287 = vsel %vm355, %v1255, 0.0
    %v1288 = vmul.f32 %v1256, %v1256
    %v1289 = vmul.f32 %v1257, %v1257
    %v1290 = vmul.f32 %v1258, %v1258
    %v1291 = vmul.f32 %v1259, %v1259
    %v1292 = vmul.f32 %v1260, %v1260
    %v1293 = vmul.f32 %v1261, %v1261
    %v1294 = vmul.f32 %v1262, %v1262
    %v1295 = vmul.f32 %v1263, %v1263
    %v1296 = vmul.f32 %v1264, %v1264
    %v1297 = vmul.f32 %v1265, %v1265
    %v1298 = vmul.f32 %v1266, %v1266
    %v1299 = vmul.f32 %v1267, %v1267
    %v1300 = vmul.f32 %v1268, %v1268
    %v1301 = vmul.f32 %v1269, %v1269
    %v1302 = vmul.f32 %v1270, %v1270
    %v1303 = vmul.f32 %v1271, %v1271
    %v1304 = vmul.f32 %v1272, %v1272
    %v1305 = vmul.f32 %v1273, %v1273
    %v1306 = vmul.f32 %v1274, %v1274
    %v1307 = vmul.f32 %v1275, %v1275
    %v1308 = vmul.f32 %v1276, %v1276
    %v1309 = vmul.f32 %v1277, %v1277
    %v1310 = vmul.f32 %v1278, %v1278
    %v1311 = vmul.f32 %v1279, %v1279
    %v1312 = vmul.f32 %v1280, %v1280
    %v1313 = vmul.f32 %v1281, %v1281
    %v1314 = vmul.f32 %v1282, %v1282
    %v1315 = vmul.f32 %v1283, %v1283
    %v1316 = vmul.f32 %v1284, %v1284
    %v1317 = vmul.f32 %v1285, %v1285
    %v1318 = vmul.f32 %v1286, %v1286
    %v1319 = vmul.f32 %v1287, %v1287
    %1320 = vadd.xlane.f32.xlu0 %v1288
    %v1321 = vpop.xlane.xlu0 %1320
    %1322 = vadd.xlane.f32.xlu0 %v1289
    %v1323 = vpop.xlane.xlu0 %1322
    %1324 = vadd.xlane.f32.xlu0 %v1290
    %v1325 = vpop.xlane.xlu0 %1324
    %1326 = vadd.xlane.f32.xlu0 %v1291
    %v1327 = vpop.xlane.xlu0 %1326
    %1328 = vadd.xlane.f32.xlu0 %v1292
    %v1329 = vpop.xlane.xlu0 %1328
    %1330 = vadd.xlane.f32.xlu0 %v1293
    %v1331 = vpop.xlane.xlu0 %1330
    %1332 = vadd.xlane.f32.xlu0 %v1294
    %v1333 = vpop.xlane.xlu0 %1332
    %1334 = vadd.xlane.f32.xlu0 %v1295
    %v1335 = vpop.xlane.xlu0 %1334
    %1336 = vadd.xlane.f32.xlu0 %v1296
    %v1337 = vpop.xlane.xlu0 %1336
    %1338 = vadd.xlane.f32.xlu0 %v1297
    %v1339 = vpop.xlane.xlu0 %1338
    %1340 = vadd.xlane.f32.xlu0 %v1298
    %v1341 = vpop.xlane.xlu0 %1340
    %1342 = vadd.xlane.f32.xlu0 %v1299
    %v1343 = vpop.xlane.xlu0 %1342
    %1344 = vadd.xlane.f32.xlu0 %v1300
    %v1345 = vpop.xlane.xlu0 %1344
    %1346 = vadd.xlane.f32.xlu0 %v1301
    %v1347 = vpop.xlane.xlu0 %1346
    %1348 = vadd.xlane.f32.xlu0 %v1302
    %v1349 = vpop.xlane.xlu0 %1348
    %1350 = vadd.xlane.f32.xlu0 %v1303
    %v1351 = vpop.xlane.xlu0 %1350
    %1352 = vadd.xlane.f32.xlu0 %v1304
    %v1353 = vpop.xlane.xlu0 %1352
    %1354 = vadd.xlane.f32.xlu0 %v1305
    %v1355 = vpop.xlane.xlu0 %1354
    %1356 = vadd.xlane.f32.xlu0 %v1306
    %v1357 = vpop.xlane.xlu0 %1356
    %1358 = vadd.xlane.f32.xlu0 %v1307
    %v1359 = vpop.xlane.xlu0 %1358
    %1360 = vadd.xlane.f32.xlu0 %v1308
    %v1361 = vpop.xlane.xlu0 %1360
    %1362 = vadd.xlane.f32.xlu0 %v1309
    %v1363 = vpop.xlane.xlu0 %1362
    %1364 = vadd.xlane.f32.xlu0 %v1310
    %v1365 = vpop.xlane.xlu0 %1364
    %1366 = vadd.xlane.f32.xlu0 %v1311
    %v1367 = vpop.xlane.xlu0 %1366
    %1368 = vadd.xlane.f32.xlu0 %v1312
    %v1369 = vpop.xlane.xlu0 %1368
    %1370 = vadd.xlane.f32.xlu0 %v1313
    %v1371 = vpop.xlane.xlu0 %1370
    %1372 = vadd.xlane.f32.xlu0 %v1314
    %v1373 = vpop.xlane.xlu0 %1372
    %1374 = vadd.xlane.f32.xlu0 %v1315
    %v1375 = vpop.xlane.xlu0 %1374
    %1376 = vadd.xlane.f32.xlu0 %v1316
    %v1377 = vpop.xlane.xlu0 %1376
    %1378 = vadd.xlane.f32.xlu0 %v1317
    %v1379 = vpop.xlane.xlu0 %1378
    %1380 = vadd.xlane.f32.xlu0 %v1318
    %v1381 = vpop.xlane.xlu0 %1380
    %1382 = vadd.xlane.f32.xlu0 %v1319
    %v1383 = vpop.xlane.xlu0 %1382
    %v1384 = vmul.f32 %v1321, 0.03125
    %v1385 = vmul.f32 %v1323, 0.03125
    %v1386 = vmul.f32 %v1325, 0.03125
    %v1387 = vmul.f32 %v1327, 0.03125
    %v1388 = vmul.f32 %v1329, 0.03125
    %v1389 = vmul.f32 %v1331, 0.03125
    %v1390 = vmul.f32 %v1333, 0.03125
    %v1391 = vmul.f32 %v1335, 0.03125
    %v1392 = vmul.f32 %v1337, 0.03125
    %v1393 = vmul.f32 %v1339, 0.03125
    %v1394 = vmul.f32 %v1341, 0.03125
    %v1395 = vmul.f32 %v1343, 0.03125
    %v1396 = vmul.f32 %v1345, 0.03125
    %v1397 = vmul.f32 %v1347, 0.03125
    %v1398 = vmul.f32 %v1349, 0.03125
    %v1399 = vmul.f32 %v1351, 0.03125
    %v1400 = vmul.f32 %v1353, 0.03125
    %v1401 = vmul.f32 %v1355, 0.03125
    %v1402 = vmul.f32 %v1357, 0.03125
    %v1403 = vmul.f32 %v1359, 0.03125
    %v1404 = vmul.f32 %v1361, 0.03125
    %v1405 = vmul.f32 %v1363, 0.03125
    %v1406 = vmul.f32 %v1365, 0.03125
    %v1407 = vmul.f32 %v1367, 0.03125
    %v1408 = vmul.f32 %v1369, 0.03125
    %v1409 = vmul.f32 %v1371, 0.03125
    %v1410 = vmul.f32 %v1373, 0.03125
    %v1411 = vmul.f32 %v1375, 0.03125
    %v1412 = vmul.f32 %v1377, 0.03125
    %v1413 = vmul.f32 %v1379, 0.03125
    %v1414 = vmul.f32 %v1381, 0.03125
    %v1415 = vmul.f32 %v1383, 0.03125
    %v1416 = vadd.f32 %v1384, 1e-05
    %v1417 = vadd.f32 %v1385, 1e-05
    %v1418 = vadd.f32 %v1386, 1e-05
    %v1419 = vadd.f32 %v1387, 1e-05
    %v1420 = vadd.f32 %v1388, 1e-05
    %v1421 = vadd.f32 %v1389, 1e-05
    %v1422 = vadd.f32 %v1390, 1e-05
    %v1423 = vadd.f32 %v1391, 1e-05
    %v1424 = vadd.f32 %v1392, 1e-05
    %v1425 = vadd.f32 %v1393, 1e-05
    %v1426 = vadd.f32 %v1394, 1e-05
    %v1427 = vadd.f32 %v1395, 1e-05
    %v1428 = vadd.f32 %v1396, 1e-05
    %v1429 = vadd.f32 %v1397, 1e-05
    %v1430 = vadd.f32 %v1398, 1e-05
    %v1431 = vadd.f32 %v1399, 1e-05
    %v1432 = vadd.f32 %v1400, 1e-05
    %v1433 = vadd.f32 %v1401, 1e-05
    %v1434 = vadd.f32 %v1402, 1e-05
    %v1435 = vadd.f32 %v1403, 1e-05
    %v1436 = vadd.f32 %v1404, 1e-05
    %v1437 = vadd.f32 %v1405, 1e-05
    %v1438 = vadd.f32 %v1406, 1e-05
    %v1439 = vadd.f32 %v1407, 1e-05
    %v1440 = vadd.f32 %v1408, 1e-05
    %v1441 = vadd.f32 %v1409, 1e-05
    %v1442 = vadd.f32 %v1410, 1e-05
    %v1443 = vadd.f32 %v1411, 1e-05
    %v1444 = vadd.f32 %v1412, 1e-05
    %v1445 = vadd.f32 %v1413, 1e-05
    %v1446 = vadd.f32 %v1414, 1e-05
    %v1447 = vadd.f32 %v1415, 1e-05
    %v1448 = vrsqrt.pop %v1416
    %v1449 = vmul.f32 %v1448, %v1416
    %v1450 = vmul.f32 %v1449, %v1448
    %v1451 = vmul.f32 0.5, %v1450
    %v1452 = vsub.f32 1.5, %v1451
    %v1453 = vmul.f32 %v1448, %v1452
    %vm1454 = vweird.f32 %v1416
    %vm1455 = vweird.f32 %v1448
    %vm1456 = vmor %vm1454, %vm1455
    %v1457 = vsel %vm1456, %v1448, %v1453
    %v1458 = vrsqrt.pop %v1417
    %v1459 = vmul.f32 %v1458, %v1417
    %v1460 = vmul.f32 %v1459, %v1458
    %v1461 = vmul.f32 0.5, %v1460
    %v1462 = vsub.f32 1.5, %v1461
    %v1463 = vmul.f32 %v1458, %v1462
    %vm1464 = vweird.f32 %v1417
    %vm1465 = vweird.f32 %v1458
    %vm1466 = vmor %vm1464, %vm1465
    %v1467 = vsel %vm1466, %v1458, %v1463
    %v1468 = vrsqrt.pop %v1418
    %v1469 = vmul.f32 %v1468, %v1418
    %v1470 = vmul.f32 %v1469, %v1468
    %v1471 = vmul.f32 0.5, %v1470
    %v1472 = vsub.f32 1.5, %v1471
    %v1473 = vmul.f32 %v1468, %v1472
    %vm1474 = vweird.f32 %v1418
    %vm1475 = vweird.f32 %v1468
    %vm1476 = vmor %vm1474, %vm1475
    %v1477 = vsel %vm1476, %v1468, %v1473
    %v1478 = vrsqrt.pop %v1419
    %v1479 = vmul.f32 %v1478, %v1419
    %v1480 = vmul.f32 %v1479, %v1478
    %v1481 = vmul.f32 0.5, %v1480
    %v1482 = vsub.f32 1.5, %v1481
    %v1483 = vmul.f32 %v1478, %v1482
    %vm1484 = vweird.f32 %v1419
    %vm1485 = vweird.f32 %v1478
    %vm1486 = vmor %vm1484, %vm1485
    %v1487 = vsel %vm1486, %v1478, %v1483
    %v1488 = vrsqrt.pop %v1420
    %v1489 = vmul.f32 %v1488, %v1420
    %v1490 = vmul.f32 %v1489, %v1488
    %v1491 = vmul.f32 0.5, %v1490
    %v1492 = vsub.f32 1.5, %v1491
    %v1493 = vmul.f32 %v1488, %v1492
    %vm1494 = vweird.f32 %v1420
    %vm1495 = vweird.f32 %v1488
    %vm1496 = vmor %vm1494, %vm1495
    %v1497 = vsel %vm1496, %v1488, %v1493
    %v1498 = vrsqrt.pop %v1421
    %v1499 = vmul.f32 %v1498, %v1421
    %v1500 = vmul.f32 %v1499, %v1498
    %v1501 = vmul.f32 0.5, %v1500
    %v1502 = vsub.f32 1.5, %v1501
    %v1503 = vmul.f32 %v1498, %v1502
    %vm1504 = vweird.f32 %v1421
    %vm1505 = vweird.f32 %v1498
    %vm1506 = vmor %vm1504, %vm1505
    %v1507 = vsel %vm1506, %v1498, %v1503
    %v1508 = vrsqrt.pop %v1422
    %v1509 = vmul.f32 %v1508, %v1422
    %v1510 = vmul.f32 %v1509, %v1508
    %v1511 = vmul.f32 0.5, %v1510
    %v1512 = vsub.f32 1.5, %v1511
    %v1513 = vmul.f32 %v1508, %v1512
    %vm1514 = vweird.f32 %v1422
    %vm1515 = vweird.f32 %v1508
    %vm1516 = vmor %vm1514, %vm1515
    %v1517 = vsel %vm1516, %v1508, %v1513
    %v1518 = vrsqrt.pop %v1423
    %v1519 = vmul.f32 %v1518, %v1423
    %v1520 = vmul.f32 %v1519, %v1518
    %v1521 = vmul.f32 0.5, %v1520
    %v1522 = vsub.f32 1.5, %v1521
    %v1523 = vmul.f32 %v1518, %v1522
    %vm1524 = vweird.f32 %v1423
    %vm1525 = vweird.f32 %v1518
    %vm1526 = vmor %vm1524, %vm1525
    %v1527 = vsel %vm1526, %v1518, %v1523
    %v1528 = vrsqrt.pop %v1424
    %v1529 = vmul.f32 %v1528, %v1424
    %v1530 = vmul.f32 %v1529, %v1528
    %v1531 = vmul.f32 0.5, %v1530
    %v1532 = vsub.f32 1.5, %v1531
    %v1533 = vmul.f32 %v1528, %v1532
    %vm1534 = vweird.f32 %v1424
    %vm1535 = vweird.f32 %v1528
    %vm1536 = vmor %vm1534, %vm1535
    %v1537 = vsel %vm1536, %v1528, %v1533
    %v1538 = vrsqrt.pop %v1425
    %v1539 = vmul.f32 %v1538, %v1425
    %v1540 = vmul.f32 %v1539, %v1538
    %v1541 = vmul.f32 0.5, %v1540
    %v1542 = vsub.f32 1.5, %v1541
    %v1543 = vmul.f32 %v1538, %v1542
    %vm1544 = vweird.f32 %v1425
    %vm1545 = vweird.f32 %v1538
    %vm1546 = vmor %vm1544, %vm1545
    %v1547 = vsel %vm1546, %v1538, %v1543
    %v1548 = vrsqrt.pop %v1426
    %v1549 = vmul.f32 %v1548, %v1426
    %v1550 = vmul.f32 %v1549, %v1548
    %v1551 = vmul.f32 0.5, %v1550
    %v1552 = vsub.f32 1.5, %v1551
    %v1553 = vmul.f32 %v1548, %v1552
    %vm1554 = vweird.f32 %v1426
    %vm1555 = vweird.f32 %v1548
    %vm1556 = vmor %vm1554, %vm1555
    %v1557 = vsel %vm1556, %v1548, %v1553
    %v1558 = vrsqrt.pop %v1427
    %v1559 = vmul.f32 %v1558, %v1427
    %v1560 = vmul.f32 %v1559, %v1558
    %v1561 = vmul.f32 0.5, %v1560
    %v1562 = vsub.f32 1.5, %v1561
    %v1563 = vmul.f32 %v1558, %v1562
    %vm1564 = vweird.f32 %v1427
    %vm1565 = vweird.f32 %v1558
    %vm1566 = vmor %vm1564, %vm1565
    %v1567 = vsel %vm1566, %v1558, %v1563
    %v1568 = vrsqrt.pop %v1428
    %v1569 = vmul.f32 %v1568, %v1428
    %v1570 = vmul.f32 %v1569, %v1568
    %v1571 = vmul.f32 0.5, %v1570
    %v1572 = vsub.f32 1.5, %v1571
    %v1573 = vmul.f32 %v1568, %v1572
    %vm1574 = vweird.f32 %v1428
    %vm1575 = vweird.f32 %v1568
    %vm1576 = vmor %vm1574, %vm1575
    %v1577 = vsel %vm1576, %v1568, %v1573
    %v1578 = vrsqrt.pop %v1429
    %v1579 = vmul.f32 %v1578, %v1429
    %v1580 = vmul.f32 %v1579, %v1578
    %v1581 = vmul.f32 0.5, %v1580
    %v1582 = vsub.f32 1.5, %v1581
    %v1583 = vmul.f32 %v1578, %v1582
    %vm1584 = vweird.f32 %v1429
    %vm1585 = vweird.f32 %v1578
    %vm1586 = vmor %vm1584, %vm1585
    %v1587 = vsel %vm1586, %v1578, %v1583
    %v1588 = vrsqrt.pop %v1430
    %v1589 = vmul.f32 %v1588, %v1430
    %v1590 = vmul.f32 %v1589, %v1588
    %v1591 = vmul.f32 0.5, %v1590
    %v1592 = vsub.f32 1.5, %v1591
    %v1593 = vmul.f32 %v1588, %v1592
    %vm1594 = vweird.f32 %v1430
    %vm1595 = vweird.f32 %v1588
    %vm1596 = vmor %vm1594, %vm1595
    %v1597 = vsel %vm1596, %v1588, %v1593
    %v1598 = vrsqrt.pop %v1431
    %v1599 = vmul.f32 %v1598, %v1431
    %v1600 = vmul.f32 %v1599, %v1598
    %v1601 = vmul.f32 0.5, %v1600
    %v1602 = vsub.f32 1.5, %v1601
    %v1603 = vmul.f32 %v1598, %v1602
    %vm1604 = vweird.f32 %v1431
    %vm1605 = vweird.f32 %v1598
    %vm1606 = vmor %vm1604, %vm1605
    %v1607 = vsel %vm1606, %v1598, %v1603
    %v1608 = vrsqrt.pop %v1432
    %v1609 = vmul.f32 %v1608, %v1432
    %v1610 = vmul.f32 %v1609, %v1608
    %v1611 = vmul.f32 0.5, %v1610
    %v1612 = vsub.f32 1.5, %v1611
    %v1613 = vmul.f32 %v1608, %v1612
    %vm1614 = vweird.f32 %v1432
    %vm1615 = vweird.f32 %v1608
    %vm1616 = vmor %vm1614, %vm1615
    %v1617 = vsel %vm1616, %v1608, %v1613
    %v1618 = vrsqrt.pop %v1433
    %v1619 = vmul.f32 %v1618, %v1433
    %v1620 = vmul.f32 %v1619, %v1618
    %v1621 = vmul.f32 0.5, %v1620
    %v1622 = vsub.f32 1.5, %v1621
    %v1623 = vmul.f32 %v1618, %v1622
    %vm1624 = vweird.f32 %v1433
    %vm1625 = vweird.f32 %v1618
    %vm1626 = vmor %vm1624, %vm1625
    %v1627 = vsel %vm1626, %v1618, %v1623
    %v1628 = vrsqrt.pop %v1434
    %v1629 = vmul.f32 %v1628, %v1434
    %v1630 = vmul.f32 %v1629, %v1628
    %v1631 = vmul.f32 0.5, %v1630
    %v1632 = vsub.f32 1.5, %v1631
    %v1633 = vmul.f32 %v1628, %v1632
    %vm1634 = vweird.f32 %v1434
    %vm1635 = vweird.f32 %v1628
    %vm1636 = vmor %vm1634, %vm1635
    %v1637 = vsel %vm1636, %v1628, %v1633
    %v1638 = vrsqrt.pop %v1435
    %v1639 = vmul.f32 %v1638, %v1435
    %v1640 = vmul.f32 %v1639, %v1638
    %v1641 = vmul.f32 0.5, %v1640
    %v1642 = vsub.f32 1.5, %v1641
    %v1643 = vmul.f32 %v1638, %v1642
    %vm1644 = vweird.f32 %v1435
    %vm1645 = vweird.f32 %v1638
    %vm1646 = vmor %vm1644, %vm1645
    %v1647 = vsel %vm1646, %v1638, %v1643
    %v1648 = vrsqrt.pop %v1436
    %v1649 = vmul.f32 %v1648, %v1436
    %v1650 = vmul.f32 %v1649, %v1648
    %v1651 = vmul.f32 0.5, %v1650
    %v1652 = vsub.f32 1.5, %v1651
    %v1653 = vmul.f32 %v1648, %v1652
    %vm1654 = vweird.f32 %v1436
    %vm1655 = vweird.f32 %v1648
    %vm1656 = vmor %vm1654, %vm1655
    %v1657 = vsel %vm1656, %v1648, %v1653
    %v1658 = vrsqrt.pop %v1437
    %v1659 = vmul.f32 %v1658, %v1437
    %v1660 = vmul.f32 %v1659, %v1658
    %v1661 = vmul.f32 0.5, %v1660
    %v1662 = vsub.f32 1.5, %v1661
    %v1663 = vmul.f32 %v1658, %v1662
    %vm1664 = vweird.f32 %v1437
    %vm1665 = vweird.f32 %v1658
    %vm1666 = vmor %vm1664, %vm1665
    %v1667 = vsel %vm1666, %v1658, %v1663
    %v1668 = vrsqrt.pop %v1438
    %v1669 = vmul.f32 %v1668, %v1438
    %v1670 = vmul.f32 %v1669, %v1668
    %v1671 = vmul.f32 0.5, %v1670
    %v1672 = vsub.f32 1.5, %v1671
    %v1673 = vmul.f32 %v1668, %v1672
    %vm1674 = vweird.f32 %v1438
    %vm1675 = vweird.f32 %v1668
    %vm1676 = vmor %vm1674, %vm1675
    %v1677 = vsel %vm1676, %v1668, %v1673
    %v1678 = vrsqrt.pop %v1439
    %v1679 = vmul.f32 %v1678, %v1439
    %v1680 = vmul.f32 %v1679, %v1678
    %v1681 = vmul.f32 0.5, %v1680
    %v1682 = vsub.f32 1.5, %v1681
    %v1683 = vmul.f32 %v1678, %v1682
    %vm1684 = vweird.f32 %v1439
    %vm1685 = vweird.f32 %v1678
    %vm1686 = vmor %vm1684, %vm1685
    %v1687 = vsel %vm1686, %v1678, %v1683
    %v1688 = vrsqrt.pop %v1440
    %v1689 = vmul.f32 %v1688, %v1440
    %v1690 = vmul.f32 %v1689, %v1688
    %v1691 = vmul.f32 0.5, %v1690
    %v1692 = vsub.f32 1.5, %v1691
    %v1693 = vmul.f32 %v1688, %v1692
    %vm1694 = vweird.f32 %v1440
    %vm1695 = vweird.f32 %v1688
    %vm1696 = vmor %vm1694, %vm1695
    %v1697 = vsel %vm1696, %v1688, %v1693
    %v1698 = vrsqrt.pop %v1441
    %v1699 = vmul.f32 %v1698, %v1441
    %v1700 = vmul.f32 %v1699, %v1698
    %v1701 = vmul.f32 0.5, %v1700
    %v1702 = vsub.f32 1.5, %v1701
    %v1703 = vmul.f32 %v1698, %v1702
    %vm1704 = vweird.f32 %v1441
    %vm1705 = vweird.f32 %v1698
    %vm1706 = vmor %vm1704, %vm1705
    %v1707 = vsel %vm1706, %v1698, %v1703
    %v1708 = vrsqrt.pop %v1442
    %v1709 = vmul.f32 %v1708, %v1442
    %v1710 = vmul.f32 %v1709, %v1708
    %v1711 = vmul.f32 0.5, %v1710
    %v1712 = vsub.f32 1.5, %v1711
    %v1713 = vmul.f32 %v1708, %v1712
    %vm1714 = vweird.f32 %v1442
    %vm1715 = vweird.f32 %v1708
    %vm1716 = vmor %vm1714, %vm1715
    %v1717 = vsel %vm1716, %v1708, %v1713
    %v1718 = vrsqrt.pop %v1443
    %v1719 = vmul.f32 %v1718, %v1443
    %v1720 = vmul.f32 %v1719, %v1718
    %v1721 = vmul.f32 0.5, %v1720
    %v1722 = vsub.f32 1.5, %v1721
    %v1723 = vmul.f32 %v1718, %v1722
    %vm1724 = vweird.f32 %v1443
    %vm1725 = vweird.f32 %v1718
    %vm1726 = vmor %vm1724, %vm1725
    %v1727 = vsel %vm1726, %v1718, %v1723
    %v1728 = vrsqrt.pop %v1444
    %v1729 = vmul.f32 %v1728, %v1444
    %v1730 = vmul.f32 %v1729, %v1728
    %v1731 = vmul.f32 0.5, %v1730
    %v1732 = vsub.f32 1.5, %v1731
    %v1733 = vmul.f32 %v1728, %v1732
    %vm1734 = vweird.f32 %v1444
    %vm1735 = vweird.f32 %v1728
    %vm1736 = vmor %vm1734, %vm1735
    %v1737 = vsel %vm1736, %v1728, %v1733
    %v1738 = vrsqrt.pop %v1445
    %v1739 = vmul.f32 %v1738, %v1445
    %v1740 = vmul.f32 %v1739, %v1738
    %v1741 = vmul.f32 0.5, %v1740
    %v1742 = vsub.f32 1.5, %v1741
    %v1743 = vmul.f32 %v1738, %v1742
    %vm1744 = vweird.f32 %v1445
    %vm1745 = vweird.f32 %v1738
    %vm1746 = vmor %vm1744, %vm1745
    %v1747 = vsel %vm1746, %v1738, %v1743
    %v1748 = vrsqrt.pop %v1446
    %v1749 = vmul.f32 %v1748, %v1446
    %v1750 = vmul.f32 %v1749, %v1748
    %v1751 = vmul.f32 0.5, %v1750
    %v1752 = vsub.f32 1.5, %v1751
    %v1753 = vmul.f32 %v1748, %v1752
    %vm1754 = vweird.f32 %v1446
    %vm1755 = vweird.f32 %v1748
    %vm1756 = vmor %vm1754, %vm1755
    %v1757 = vsel %vm1756, %v1748, %v1753
    %v1758 = vrsqrt.pop %v1447
    %v1759 = vmul.f32 %v1758, %v1447
    %v1760 = vmul.f32 %v1759, %v1758
    %v1761 = vmul.f32 0.5, %v1760
    %v1762 = vsub.f32 1.5, %v1761
    %v1763 = vmul.f32 %v1758, %v1762
    %vm1764 = vweird.f32 %v1447
    %vm1765 = vweird.f32 %v1758
    %vm1766 = vmor %vm1764, %vm1765
    %v1767 = vsel %vm1766, %v1758, %v1763
    %v1768 = vmul.f32 %v1256, %v1457
    %v1769 = vmul.f32 %v1257, %v1467
    %v1770 = vmul.f32 %v1258, %v1477
    %v1771 = vmul.f32 %v1259, %v1487
    %v1772 = vmul.f32 %v1260, %v1497
    %v1773 = vmul.f32 %v1261, %v1507
    %v1774 = vmul.f32 %v1262, %v1517
    %v1775 = vmul.f32 %v1263, %v1527
    %v1776 = vmul.f32 %v1264, %v1537
    %v1777 = vmul.f32 %v1265, %v1547
    %v1778 = vmul.f32 %v1266, %v1557
    %v1779 = vmul.f32 %v1267, %v1567
    %v1780 = vmul.f32 %v1268, %v1577
    %v1781 = vmul.f32 %v1269, %v1587
    %v1782 = vmul.f32 %v1270, %v1597
    %v1783 = vmul.f32 %v1271, %v1607
    %v1784 = vmul.f32 %v1272, %v1617
    %v1785 = vmul.f32 %v1273, %v1627
    %v1786 = vmul.f32 %v1274, %v1637
    %v1787 = vmul.f32 %v1275, %v1647
    %v1788 = vmul.f32 %v1276, %v1657
    %v1789 = vmul.f32 %v1277, %v1667
    %v1790 = vmul.f32 %v1278, %v1677
    %v1791 = vmul.f32 %v1279, %v1687
    %v1792 = vmul.f32 %v1280, %v1697
    %v1793 = vmul.f32 %v1281, %v1707
    %v1794 = vmul.f32 %v1282, %v1717
    %v1795 = vmul.f32 %v1283, %v1727
    %v1796 = vmul.f32 %v1284, %v1737
    %v1797 = vmul.f32 %v1285, %v1747
    %v1798 = vmul.f32 %v1286, %v1757
    %v1799 = vmul.f32 %v1287, %v1767
    %v1800 = vperm.slane %v60, 4
    %v1801 = vmul.f32 %v1768, %v1800
    %v1802 = vmul.f32 %v1769, %v1800
    %v1803 = vmul.f32 %v1770, %v1800
    %v1804 = vmul.f32 %v1771, %v1800
    %v1805 = vmul.f32 %v1772, %v1800
    %v1806 = vmul.f32 %v1773, %v1800
    %v1807 = vmul.f32 %v1774, %v1800
    %v1808 = vmul.f32 %v1775, %v1800
    %v1809 = vmul.f32 %v1776, %v1800
    %v1810 = vmul.f32 %v1777, %v1800
    %v1811 = vmul.f32 %v1778, %v1800
    %v1812 = vmul.f32 %v1779, %v1800
    %v1813 = vmul.f32 %v1780, %v1800
    %v1814 = vmul.f32 %v1781, %v1800
    %v1815 = vmul.f32 %v1782, %v1800
    %v1816 = vmul.f32 %v1783, %v1800
    %v1817 = vmul.f32 %v1784, %v1800
    %v1818 = vmul.f32 %v1785, %v1800
    %v1819 = vmul.f32 %v1786, %v1800
    %v1820 = vmul.f32 %v1787, %v1800
    %v1821 = vmul.f32 %v1788, %v1800
    %v1822 = vmul.f32 %v1789, %v1800
    %v1823 = vmul.f32 %v1790, %v1800
    %v1824 = vmul.f32 %v1791, %v1800
    %v1825 = vmul.f32 %v1792, %v1800
    %v1826 = vmul.f32 %v1793, %v1800
    %v1827 = vmul.f32 %v1794, %v1800
    %v1828 = vmul.f32 %v1795, %v1800
    %v1829 = vmul.f32 %v1796, %v1800
    %v1830 = vmul.f32 %v1797, %v1800
    %v1831 = vmul.f32 %v1798, %v1800
    %v1832 = vmul.f32 %v1799, %v1800
    %v1833 = vperm.slane %v60, 5
    %v1834 = vadd.f32 %v1801, %v1833
    %v1835 = vadd.f32 %v1802, %v1833
    %v1836 = vadd.f32 %v1803, %v1833
    %v1837 = vadd.f32 %v1804, %v1833
    %v1838 = vadd.f32 %v1805, %v1833
    %v1839 = vadd.f32 %v1806, %v1833
    %v1840 = vadd.f32 %v1807, %v1833
    %v1841 = vadd.f32 %v1808, %v1833
    %v1842 = vadd.f32 %v1809, %v1833
    %v1843 = vadd.f32 %v1810, %v1833
    %v1844 = vadd.f32 %v1811, %v1833
    %v1845 = vadd.f32 %v1812, %v1833
    %v1846 = vadd.f32 %v1813, %v1833
    %v1847 = vadd.f32 %v1814, %v1833
    %v1848 = vadd.f32 %v1815, %v1833
    %v1849 = vadd.f32 %v1816, %v1833
    %v1850 = vadd.f32 %v1817, %v1833
    %v1851 = vadd.f32 %v1818, %v1833
    %v1852 = vadd.f32 %v1819, %v1833
    %v1853 = vadd.f32 %v1820, %v1833
    %v1854 = vadd.f32 %v1821, %v1833
    %v1855 = vadd.f32 %v1822, %v1833
    %v1856 = vadd.f32 %v1823, %v1833
    %v1857 = vadd.f32 %v1824, %v1833
    %v1858 = vadd.f32 %v1825, %v1833
    %v1859 = vadd.f32 %v1826, %v1833
    %v1860 = vadd.f32 %v1827, %v1833
    %v1861 = vadd.f32 %v1828, %v1833
    %v1862 = vadd.f32 %v1829, %v1833
    %v1863 = vadd.f32 %v1830, %v1833
    %v1864 = vadd.f32 %v1831, %v1833
    %v1865 = vadd.f32 %v1832, %v1833
    %v1866 = vmax.f32 %v1834, 0.0
    %v1867 = vmax.f32 %v1835, 0.0
    %v1868 = vmax.f32 %v1836, 0.0
    %v1869 = vmax.f32 %v1837, 0.0
    %v1870 = vmax.f32 %v1838, 0.0
    %v1871 = vmax.f32 %v1839, 0.0
    %v1872 = vmax.f32 %v1840, 0.0
    %v1873 = vmax.f32 %v1841, 0.0
    %v1874 = vmax.f32 %v1842, 0.0
    %v1875 = vmax.f32 %v1843, 0.0
    %v1876 = vmax.f32 %v1844, 0.0
    %v1877 = vmax.f32 %v1845, 0.0
    %v1878 = vmax.f32 %v1846, 0.0
    %v1879 = vmax.f32 %v1847, 0.0
    %v1880 = vmax.f32 %v1848, 0.0
    %v1881 = vmax.f32 %v1849, 0.0
    %v1882 = vmax.f32 %v1850, 0.0
    %v1883 = vmax.f32 %v1851, 0.0
    %v1884 = vmax.f32 %v1852, 0.0
    %v1885 = vmax.f32 %v1853, 0.0
    %v1886 = vmax.f32 %v1854, 0.0
    %v1887 = vmax.f32 %v1855, 0.0
    %v1888 = vmax.f32 %v1856, 0.0
    %v1889 = vmax.f32 %v1857, 0.0
    %v1890 = vmax.f32 %v1858, 0.0
    %v1891 = vmax.f32 %v1859, 0.0
    %v1892 = vmax.f32 %v1860, 0.0
    %v1893 = vmax.f32 %v1861, 0.0
    %v1894 = vmax.f32 %v1862, 0.0
    %v1895 = vmax.f32 %v1863, 0.0
    %v1896 = vmax.f32 %v1864, 0.0
    %v1897 = vmax.f32 %v1865, 0.0
    %v1898 = vld [vmem:[#allocation5 + $0x100] sm:$0xff]
    %v1899 = vld [vmem:[#allocation5 + $0x108] sm:$0xff]
    %v1900 = vld [vmem:[#allocation5 + $0x110] sm:$0xff]
    %v1901 = vld [vmem:[#allocation5 + $0x118] sm:$0xff]
    %v1902 = vld [vmem:[#allocation5 + $0x120] sm:$0xff]
    %v1903 = vld [vmem:[#allocation5 + $0x128] sm:$0xff]
    %v1904 = vld [vmem:[#allocation5 + $0x130] sm:$0xff]
    %v1905 = vld [vmem:[#allocation5 + $0x138] sm:$0xff]
    %v1906 = vld [vmem:[#allocation5 + $0x140] sm:$0xff]
    %v1907 = vld [vmem:[#allocation5 + $0x148] sm:$0xff]
    %v1908 = vld [vmem:[#allocation5 + $0x150] sm:$0xff]
    %v1909 = vld [vmem:[#allocation5 + $0x158] sm:$0xff]
    %v1910 = vld [vmem:[#allocation5 + $0x160] sm:$0xff]
    %v1911 = vld [vmem:[#allocation5 + $0x168] sm:$0xff]
    %v1912 = vld [vmem:[#allocation5 + $0x170] sm:$0xff]
    %v1913 = vld [vmem:[#allocation5 + $0x178] sm:$0xff]
    %v1914 = vperm.slane %v60, 6
    %1915 = vmatpush.msra.mxu0 %v1913
    %1916 = vmatpush.msra.mxu0 %v1912
    %1917 = vmatpush.msra.mxu0 %v1911
    %1918 = vmatpush.msra.mxu0 %v1910
    %1919 = vmatpush.msra.mxu0 %v1909
    %1920 = vmatpush.msra.mxu0 %v1908
    %1921 = vmatpush.msra.mxu0 %v1907
    %1922 = vmatpush.msra.mxu0 %v1906
    %1923 = vmatpush.msra.mxu0 %v1905
    %1924 = vmatpush.msra.mxu0 %v1904
    %1925 = vmatpush.msra.mxu0 %v1903
    %1926 = vmatpush.msra.mxu0 %v1902
    %1927 = vmatpush.msra.mxu0 %v1901
    %1928 = vmatpush.msra.mxu0 %v1900
    %1929 = vmatpush.msra.mxu0 %v1899
    %1930 = vmatpush.msra.mxu0 %v1898
    %1931 = vmatmul.f32.gmra.mxu0 %v1866
    %v1932 = vpop.f32.mrf.mxu0
    %v1933 = vadd.f32 %v1914, %v1932
    %1934 = vmatmul.f32.gmra.mxu0 %v1867
    %v1935 = vpop.f32.mrf.mxu0
    %v1936 = vadd.f32 %v1914, %v1935
    %1937 = vmatmul.f32.gmra.mxu0 %v1868
    %v1938 = vpop.f32.mrf.mxu0
    %v1939 = vadd.f32 %v1914, %v1938
    %1940 = vmatmul.f32.gmra.mxu0 %v1869
    %v1941 = vpop.f32.mrf.mxu0
    %v1942 = vadd.f32 %v1914, %v1941
    %1943 = vmatmul.f32.gmra.mxu0 %v1870
    %v1944 = vpop.f32.mrf.mxu0
    %v1945 = vadd.f32 %v1914, %v1944
    %1946 = vmatmul.f32.gmra.mxu0 %v1871
    %v1947 = vpop.f32.mrf.mxu0
    %v1948 = vadd.f32 %v1914, %v1947
    %1949 = vmatmul.f32.gmra.mxu0 %v1872
    %v1950 = vpop.f32.mrf.mxu0
    %v1951 = vadd.f32 %v1914, %v1950
    %1952 = vmatmul.f32.gmra.mxu0 %v1873
    %v1953 = vpop.f32.mrf.mxu0
    %v1954 = vadd.f32 %v1914, %v1953
    %1955 = vmatmul.f32.gmra.mxu0 %v1874
    %v1956 = vpop.f32.mrf.mxu0
    %v1957 = vadd.f32 %v1914, %v1956
    %1958 = vmatmul.f32.gmra.mxu0 %v1875
    %v1959 = vpop.f32.mrf.mxu0
    %v1960 = vadd.f32 %v1914, %v1959
    %1961 = vmatmul.f32.gmra.mxu0 %v1876
    %v1962 = vpop.f32.mrf.mxu0
    %v1963 = vadd.f32 %v1914, %v1962
    %1964 = vmatmul.f32.gmra.mxu0 %v1877
    %v1965 = vpop.f32.mrf.mxu0
    %v1966 = vadd.f32 %v1914, %v1965
    %1967 = vmatmul.f32.gmra.mxu0 %v1878
    %v1968 = vpop.f32.mrf.mxu0
    %v1969 = vadd.f32 %v1914, %v1968
    %1970 = vmatmul.f32.gmra.mxu0 %v1879
    %v1971 = vpop.f32.mrf.mxu0
    %v1972 = vadd.f32 %v1914, %v1971
    %1973 = vmatmul.f32.gmra.mxu0 %v1880
    %v1974 = vpop.f32.mrf.mxu0
    %v1975 = vadd.f32 %v1914, %v1974
    %1976 = vmatmul.f32.gmra.mxu0 %v1881
    %v1977 = vpop.f32.mrf.mxu0
    %v1978 = vadd.f32 %v1914, %v1977
    %1979 = vmatmul.f32.gmra.mxu0 %v1882
    %v1980 = vpop.f32.mrf.mxu0
    %v1981 = vadd.f32 %v1914, %v1980
    %1982 = vmatmul.f32.gmra.mxu0 %v1883
    %v1983 = vpop.f32.mrf.mxu0
    %v1984 = vadd.f32 %v1914, %v1983
    %1985 = vmatmul.f32.gmra.mxu0 %v1884
    %v1986 = vpop.f32.mrf.mxu0
    %v1987 = vadd.f32 %v1914, %v1986
    %1988 = vmatmul.f32.gmra.mxu0 %v1885
    %v1989 = vpop.f32.mrf.mxu0
    %v1990 = vadd.f32 %v1914, %v1989
    %1991 = vmatmul.f32.gmra.mxu0 %v1886
    %v1992 = vpop.f32.mrf.mxu0
    %v1993 = vadd.f32 %v1914, %v1992
    %1994 = vmatmul.f32.gmra.mxu0 %v1887
    %v1995 = vpop.f32.mrf.mxu0
    %v1996 = vadd.f32 %v1914, %v1995
    %1997 = vmatmul.f32.gmra.mxu0 %v1888
    %v1998 = vpop.f32.mrf.mxu0
    %v1999 = vadd.f32 %v1914, %v1998
    %2000 = vmatmul.f32.gmra.mxu0 %v1889
    %v2001 = vpop.f32.mrf.mxu0
    %v2002 = vadd.f32 %v1914, %v2001
    %2003 = vmatmul.f32.gmra.mxu0 %v1890
    %v2004 = vpop.f32.mrf.mxu0
    %v2005 = vadd.f32 %v1914, %v2004
    %2006 = vmatmul.f32.gmra.mxu0 %v1891
    %v2007 = vpop.f32.mrf.mxu0
    %v2008 = vadd.f32 %v1914, %v2007
    %2009 = vmatmul.f32.gmra.mxu0 %v1892
    %v2010 = vpop.f32.mrf.mxu0
    %v2011 = vadd.f32 %v1914, %v2010
    %2012 = vmatmul.f32.gmra.mxu0 %v1893
    %v2013 = vpop.f32.mrf.mxu0
    %v2014 = vadd.f32 %v1914, %v2013
    %2015 = vmatmul.f32.gmra.mxu0 %v1894
    %v2016 = vpop.f32.mrf.mxu0
    %v2017 = vadd.f32 %v1914, %v2016
    %2018 = vmatmul.f32.gmra.mxu0 %v1895
    %v2019 = vpop.f32.mrf.mxu0
    %v2020 = vadd.f32 %v1914, %v2019
    %2021 = vmatmul.f32.gmra.mxu0 %v1896
    %v2022 = vpop.f32.mrf.mxu0
    %v2023 = vadd.f32 %v1914, %v2022
    %2024 = vmatmul.f32.gmra.mxu0 %v1897
    %v2025 = vpop.f32.mrf.mxu0
    %v2026 = vadd.f32 %v1914, %v2025
    %2027 = vdwg.mxu0
    %v2028 = vtanh.pop %v1933
    %v2029 = vtanh.pop %v1936
    %v2030 = vtanh.pop %v1939
    %v2031 = vtanh.pop %v1942
    %v2032 = vtanh.pop %v1945
    %v2033 = vtanh.pop %v1948
    %v2034 = vtanh.pop %v1951
    %v2035 = vtanh.pop %v1954
    %v2036 = vtanh.pop %v1957
    %v2037 = vtanh.pop %v1960
    %v2038 = vtanh.pop %v1963
    %v2039 = vtanh.pop %v1966
    %v2040 = vtanh.pop %v1969
    %v2041 = vtanh.pop %v1972
    %v2042 = vtanh.pop %v1975
    %v2043 = vtanh.pop %v1978
    %v2044 = vtanh.pop %v1981
    %v2045 = vtanh.pop %v1984
    %v2046 = vtanh.pop %v1987
    %v2047 = vtanh.pop %v1990
    %v2048 = vtanh.pop %v1993
    %v2049 = vtanh.pop %v1996
    %v2050 = vtanh.pop %v1999
    %v2051 = vtanh.pop %v2002
    %v2052 = vtanh.pop %v2005
    %v2053 = vtanh.pop %v2008
    %v2054 = vtanh.pop %v2011
    %v2055 = vtanh.pop %v2014
    %v2056 = vtanh.pop %v2017
    %v2057 = vtanh.pop %v2020
    %v2058 = vtanh.pop %v2023
    %v2059 = vtanh.pop %v2026
    %2060 = vst [vmem:[#allocation8] sm:$0xff] %v2028
    %2061 = vst [vmem:[#allocation8 + $0x8] sm:$0xff] %v2029
    %2062 = vst [vmem:[#allocation8 + $0x10] sm:$0xff] %v2030
    %2063 = vst [vmem:[#allocation8 + $0x18] sm:$0xff] %v2031
    %2064 = vst [vmem:[#allocation8 + $0x20] sm:$0xff] %v2032
    %2065 = vst [vmem:[#allocation8 + $0x28] sm:$0xff] %v2033
    %2066 = vst [vmem:[#allocation8 + $0x30] sm:$0xff] %v2034
    %2067 = vst [vmem:[#allocation8 + $0x38] sm:$0xff] %v2035
    %2068 = vst [vmem:[#allocation8 + $0x40] sm:$0xff] %v2036
    %2069 = vst [vmem:[#allocation8 + $0x48] sm:$0xff] %v2037
    %2070 = vst [vmem:[#allocation8 + $0x50] sm:$0xff] %v2038
    %2071 = vst [vmem:[#allocation8 + $0x58] sm:$0xff] %v2039
    %2072 = vst [vmem:[#allocation8 + $0x60] sm:$0xff] %v2040
    %2073 = vst [vmem:[#allocation8 + $0x68] sm:$0xff] %v2041
    %2074 = vst [vmem:[#allocation8 + $0x70] sm:$0xff] %v2042
    %2075 = vst [vmem:[#allocation8 + $0x78] sm:$0xff] %v2043
    %2076 = vst [vmem:[#allocation8 + $0x80] sm:$0xff] %v2044
    %2077 = vst [vmem:[#allocation8 + $0x88] sm:$0xff] %v2045
    %2078 = vst [vmem:[#allocation8 + $0x90] sm:$0xff] %v2046
    %2079 = vst [vmem:[#allocation8 + $0x98] sm:$0xff] %v2047
    %2080 = vst [vmem:[#allocation8 + $0xa0] sm:$0xff] %v2048
    %2081 = vst [vmem:[#allocation8 + $0xa8] sm:$0xff] %v2049
    %2082 = vst [vmem:[#allocation8 + $0xb0] sm:$0xff] %v2050
    %2083 = vst [vmem:[#allocation8 + $0xb8] sm:$0xff] %v2051
    %2084 = vst [vmem:[#allocation8 + $0xc0] sm:$0xff] %v2052
    %2085 = vst [vmem:[#allocation8 + $0xc8] sm:$0xff] %v2053
    %2086 = vst [vmem:[#allocation8 + $0xd0] sm:$0xff] %v2054
    %2087 = vst [vmem:[#allocation8 + $0xd8] sm:$0xff] %v2055
    %2088 = vst [vmem:[#allocation8 + $0xe0] sm:$0xff] %v2056
    %2089 = vst [vmem:[#allocation8 + $0xe8] sm:$0xff] %v2057
    %2090 = vst [vmem:[#allocation8 + $0xf0] sm:$0xff] %v2058
    %2091 = vst [vmem:[#allocation8 + $0xf8] sm:$0xff] %v2059
    // Predicated region
    $region26: #{tpu_custom_call.1} parent=1 // pred_check
      _
    $region27: #{tpu_custom_call.1} parent=1 // pred_check_branch
      %2093 = sbr.rel (0) target = $region29
    $region28: #{tpu_custom_call.1} parent=1 // pred_region
      %2095 = vsyncadd [#allocation4], 0
      %s2096 = sshll.u32 [#allocation8], 4
      %s2097 = int_to_ptr.vmem [resolvable:$true] %s2096
      %s2098 = sshll.u32 %s3, 4
      %s2099 = int_to_ptr.hbm [resolvable:$true] %s2098
      %2104 = dma.vmem_to_hbm [thread:$0]  %s2097, 4096, %s2099, [#allocation4], 128, 128, 8
    $region29: #{tpu_custom_call.1} parent=1 // pred_fallthru
      _
    // Predicated region
    $region30: #{tpu_custom_call.1} parent=1 // pred_check
      _
    $region31: #{tpu_custom_call.1} parent=1 // pred_check_branch
      %2106 = sbr.rel (0) target = $region33
    $region32: #{tpu_custom_call.1} parent=1 // pred_region
      %2108 = dma.done [#allocation4], 4096
    $region33: #{tpu_custom_call.1} parent=1 // pred_fallthru
      _
    %2109 = vsyncpa [#allocation3], 1
    %2110 = vsyncpa [#allocation6], 1
    %2111 = vsyncpa [#allocation4], 1

</llo_original>
